<compile_context>
chip_gen: v7x
topology: tpu7x:2x2x1
jax: 0.10.0
libtpu: 0.0.40
codegen_flags: <defaults>
</compile_context>

<pallas_src>
import math
from functools import partial

import jax
import jax.numpy as jnp
from jax import lax
from jax.experimental import pallas as pl
from jax.experimental.pallas import tpu as pltpu

_PAR = "parallel"
_ARB = "arbitrary"
_INV_SQRT2 = 1.0 / math.sqrt(2.0)


# ------------------------------ tiling utils ------------------------------

def _tile(dim, target, align):
    """Largest `align`-multiple tile <= target that evenly divides `dim`.
    Falls back to the full dim (always satisfies the TPU (8,128) block rule)."""
    if dim <= target:
        return dim
    t = (target // align) * align
    while t >= align:
        if dim % t == 0:
            return t
        t -= align
    return dim


def _ln(x, g, b, eps):
    # Biased variance -> matches PyTorch nn.LayerNorm. Stats kept in f32.
    mu = jnp.mean(x, axis=-1, keepdims=True)
    var = jnp.mean((x - mu) ** 2, axis=-1, keepdims=True)
    return (x - mu) * lax.rsqrt(var + eps) * g + b


def _gelu(x):
    # nn.GELU() default = exact erf form (FeedForward(act='relu') falls to GELU).
    return 0.5 * x * (1.0 + lax.erf(x * _INV_SQRT2))


# ---------------------------- Pallas kernels ----------------------------

def _linear_kernel(x_ref, w_ref, b_ref, *rest, act, has_res):
    # Tiled o = act(x @ w + b) [+ residual]; bf16 MXU, f32 accumulation over K.
    if has_res:
        res_ref, o_ref, acc_ref = rest
    else:
        o_ref, acc_ref = rest

    @pl.when(pl.program_id(2) == 0)
    def _():
        acc_ref[...] = jnp.zeros_like(acc_ref)

    acc_ref[...] += jnp.dot(x_ref[...].astype(jnp.bfloat16), w_ref[...],
                            preferred_element_type=jnp.float32)

    @pl.when(pl.program_id(2) == pl.num_programs(2) - 1)
    def _():
        y = acc_ref[...] + b_ref[...]
        if act == "relu":
            y = jnp.maximum(y, 0.0)
        elif act == "gelu":
            y = _gelu(y)
        if has_res:
            y = y + res_ref[...]          # fused residual add (free under MXU)
        o_ref[...] = y.astype(o_ref.dtype)


def pallas_linear(x, w_bf16, b, act=None, residual=None):
    M, K = x.shape
    N = w_bf16.shape[1]
    tm = _tile(M, 256, 8)
    tn = _tile(N, 512, 128)
    tk = _tile(K, 512, 128)
    has_res = residual is not None
    in_specs = [
        pl.BlockSpec((tm, tk), lambda i, j, k: (i, k)),
        pl.BlockSpec((tk, tn), lambda i, j, k: (k, j)),
        pl.BlockSpec((1, tn), lambda i, j, k: (0, j)),
    ]
    args = [x, w_bf16, b.reshape(1, N)]
    if has_res:
        in_specs.append(pl.BlockSpec((tm, tn), lambda i, j, k: (i, j)))
        args.append(residual)
    return pl.pallas_call(
        partial(_linear_kernel, act=act, has_res=has_res),
        out_shape=jax.ShapeDtypeStruct((M, N), jnp.float32),
        grid=(M // tm, N // tn, K // tk),
        in_specs=in_specs,
        out_specs=pl.BlockSpec((tm, tn), lambda i, j, k: (i, j)),
        scratch_shapes=[pltpu.VMEM((tm, tn), jnp.float32)],
        compiler_params=pltpu.CompilerParams(
            dimension_semantics=(_PAR, _PAR, _ARB)),
    )(*args)


def _ln_qkv_kernel(x_ref, g_ref, b_ref, w_ref, o_ref, x2_ref, *, eps):
    # Fused LayerNorm + fused QKV projection, tiled over the 3D output axis.
    # LN result is computed once per row tile and cached in bf16 VMEM scratch.
    @pl.when(pl.program_id(1) == 0)
    def _():
        x2_ref[...] = _ln(x_ref[...], g_ref[...], b_ref[...], eps).astype(jnp.bfloat16)

    o_ref[...] = jnp.dot(x2_ref[...], w_ref[...],
                         preferred_element_type=jnp.float32).astype(o_ref.dtype)


def pallas_ln_qkv(x, g, b, wqkv_bf16, eps=1e-5):
    M, D = x.shape
    N = wqkv_bf16.shape[1]          # 3*D
    tm = _tile(M, 512, 8)
    tn = _tile(N, 512, 128)
    return pl.pallas_call(
        partial(_ln_qkv_kernel, eps=eps),
        out_shape=jax.ShapeDtypeStruct((M, N), jnp.bfloat16),
        grid=(M // tm, N // tn),
        in_specs=[
            pl.BlockSpec((tm, D), lambda i, n: (i, 0)),
            pl.BlockSpec((1, D), lambda i, n: (0, 0)),
            pl.BlockSpec((1, D), lambda i, n: (0, 0)),
            pl.BlockSpec((D, tn), lambda i, n: (0, n)),
        ],
        out_specs=pl.BlockSpec((tm, tn), lambda i, n: (i, n)),
        scratch_shapes=[pltpu.VMEM((tm, D), jnp.bfloat16)],
        compiler_params=pltpu.CompilerParams(dimension_semantics=(_PAR, _ARB)),
    )(x, g.reshape(1, D), b.reshape(1, D), wqkv_bf16)


def _attention_kernel(q_ref, kv_ref, bias_ref, o_ref, *, heads, dk):
    # One (batch, q-block) per grid step; per-head static lane slices of the fused
    # (rows, 3D) QKV block. Scale is pre-folded into the Q weight columns.
    D = heads * dk
    q_all = q_ref[...]                       # (tq, 3D) bf16
    kv = kv_ref[...]                         # (S, 3D) bf16
    bias = bias_ref[...]                     # (tq, S) f32 additive mask
    outs = []
    for h in range(heads):
        qh = q_all[:, h * dk:(h + 1) * dk]
        kh = kv[:, D + h * dk: D + (h + 1) * dk]
        vh = kv[:, 2 * D + h * dk: 2 * D + (h + 1) * dk]
        # contract the d_k dims directly -> no materialized transpose
        s = lax.dot_general(qh, kh, (((1,), (1,)), ((), ())),
                            preferred_element_type=jnp.float32)
        s = s + bias
        s = s - jnp.max(s, axis=-1, keepdims=True)
        p = jnp.exp(s)
        p = p * pl.reciprocal(jnp.sum(p, axis=-1, keepdims=True), approx=True)
        outs.append(jnp.dot(p.astype(jnp.bfloat16), vh,
                            preferred_element_type=jnp.float32))
    # single lane-dense (tq, D) store
    o_ref[...] = jnp.concatenate(outs, axis=-1).astype(o_ref.dtype)


def pallas_attention(qkv, mask_bias, heads):
    # qkv: (B, S, 3D) bf16 (Q|K|V packed along lanes). Output: (B, S, D) bf16.
    B, S, ND = qkv.shape
    D = ND // 3
    dk = D // heads
    tq = _tile(S, 256, 8)
    return pl.pallas_call(
        partial(_attention_kernel, heads=heads, dk=dk),
        out_shape=jax.ShapeDtypeStruct((B, S, D), jnp.bfloat16),
        grid=(B, S // tq),
        in_specs=[
            pl.BlockSpec((None, tq, ND), lambda b, qi: (b, qi, 0)),   # q rows
            pl.BlockSpec((None, S, ND), lambda b, qi: (b, 0, 0)),     # k/v (once per b)
            pl.BlockSpec((None, tq, S), lambda b, qi: (b, qi, 0)),    # mask bias
        ],
        out_specs=pl.BlockSpec((None, tq, D), lambda b, qi: (b, qi, 0)),
        compiler_params=pltpu.CompilerParams(dimension_semantics=(_PAR, _PAR)),
    )(qkv, qkv, mask_bias)


def _ln_ffn_kernel(x_ref, g_ref, b_ref, w1_ref, b1_ref, w2_ref, b2_ref, o_ref,
                   x2_ref, acc_ref, *, eps):
    # Fused LayerNorm + FFN (GELU) + residual. The hidden (4*D) dimension is
    # streamed in tiles; the residual x_ref is already resident -> fused add.
    f = pl.program_id(1)

    @pl.when(f == 0)
    def _():
        x2_ref[...] = _ln(x_ref[...], g_ref[...], b_ref[...], eps).astype(jnp.bfloat16)
        acc_ref[...] = jnp.zeros_like(acc_ref)

    h = jnp.dot(x2_ref[...], w1_ref[...],
                preferred_element_type=jnp.float32) + b1_ref[...]
    h = _gelu(h)
    acc_ref[...] += jnp.dot(h.astype(jnp.bfloat16), w2_ref[...],
                            preferred_element_type=jnp.float32)

    @pl.when(f == pl.num_programs(1) - 1)
    def _():
        o_ref[...] = acc_ref[...] + b2_ref[...] + x_ref[...]   # fused residual


def pallas_ln_ffn(x, g, b, w1_bf16, b1, w2_bf16, b2, eps=1e-5):
    M, D = x.shape
    F_ = w1_bf16.shape[1]
    tm = _tile(M, 256, 8)
    tf = _tile(F_, 512, 128)
    return pl.pallas_call(
        partial(_ln_ffn_kernel, eps=eps),
        out_shape=jax.ShapeDtypeStruct((M, D), jnp.float32),
        grid=(M // tm, F_ // tf),
        in_specs=[
            pl.BlockSpec((tm, D), lambda i, f: (i, 0)),
            pl.BlockSpec((1, D), lambda i, f: (0, 0)),
            pl.BlockSpec((1, D), lambda i, f: (0, 0)),
            pl.BlockSpec((D, tf), lambda i, f: (0, f)),
            pl.BlockSpec((1, tf), lambda i, f: (0, f)),
            pl.BlockSpec((tf, D), lambda i, f: (f, 0)),
            pl.BlockSpec((1, D), lambda i, f: (0, 0)),
        ],
        out_specs=pl.BlockSpec((tm, D), lambda i, f: (i, 0)),
        scratch_shapes=[pltpu.VMEM((tm, D), jnp.bfloat16),
                        pltpu.VMEM((tm, D), jnp.float32)],
        compiler_params=pltpu.CompilerParams(dimension_semantics=(_PAR, _ARB)),
    )(x, g.reshape(1, D), b.reshape(1, D), w1_bf16, b1.reshape(1, F_),
      w2_bf16, b2.reshape(1, D))


def _ln_head_pair_kernel(x_ref, g_ref, b_ref, w_ref, ob_ref, o_ref, *, eps, m):
    # Fused final LayerNorm + output linear + per-pair 2-way softmax.
    # Head weight columns are pre-permuted so lanes [0:m) are class-0 logits and
    # lanes [m:2m) are class-1 logits -> lane-dense sigmoid(a - b).
    xn = _ln(x_ref[...], g_ref[...], b_ref[...], eps)
    logits = jnp.dot(xn.astype(jnp.bfloat16), w_ref[...],
                     preferred_element_type=jnp.float32) + ob_ref[...]
    a = logits[:, :m]
    c = logits[:, m:]
    d = a - c
    e = jnp.exp(-jnp.abs(d))
    pa = jnp.where(d >= 0, 1.0 / (1.0 + e), e / (1.0 + e))   # softmax([a,c])[0]
    o_ref[...] = jnp.concatenate([pa, 1.0 - pa], axis=-1)


def pallas_ln_head_pair(x, g, b, w_perm_bf16, b_perm, m, eps=1e-5):
    M, D = x.shape
    N = w_perm_bf16.shape[1]        # 2*m
    tm = _tile(M, 512, 8)
    return pl.pallas_call(
        partial(_ln_head_pair_kernel, eps=eps, m=m),
        out_shape=jax.ShapeDtypeStruct((M, N), jnp.float32),
        grid=(M // tm,),
        in_specs=[
            pl.BlockSpec((tm, D), lambda i: (i, 0)),
            pl.BlockSpec((1, D), lambda i: (0, 0)),
            pl.BlockSpec((1, D), lambda i: (0, 0)),
            pl.BlockSpec((D, N), lambda i: (0, 0)),
            pl.BlockSpec((1, N), lambda i: (0, 0)),
        ],
        out_specs=pl.BlockSpec((tm, N), lambda i: (i, 0)),
        compiler_params=pltpu.CompilerParams(dimension_semantics=(_PAR,)),
    )(x, g.reshape(1, D), b.reshape(1, D), w_perm_bf16, b_perm.reshape(1, N))


def _layernorm_kernel(x_ref, g_ref, b_ref, o_ref, *, eps):
    o_ref[...] = _ln(x_ref[...], g_ref[...], b_ref[...], eps)


def pallas_layernorm(x, g, b, eps=1e-5):
    M, D = x.shape
    tm = _tile(M, 512, 8)
    return pl.pallas_call(
        partial(_layernorm_kernel, eps=eps),
        out_shape=jax.ShapeDtypeStruct((M, D), jnp.float32),
        grid=(M // tm,),
        in_specs=[pl.BlockSpec((tm, D), lambda i: (i, 0)),
                  pl.BlockSpec((1, D), lambda i: (0, 0)),
                  pl.BlockSpec((1, D), lambda i: (0, 0))],
        out_specs=pl.BlockSpec((tm, D), lambda i: (i, 0)),
        compiler_params=pltpu.CompilerParams(dimension_semantics=(_PAR,)),
    )(x, g.reshape(1, D), b.reshape(1, D))


def _softmax_kernel(x_ref, o_ref):
    x = x_ref[...]
    x = x - jnp.max(x, axis=-1, keepdims=True)
    e = jnp.exp(x)
    o_ref[...] = e * pl.reciprocal(jnp.sum(e, axis=-1, keepdims=True), approx=True)


def pallas_softmax_lastdim(x):
    M, C = x.shape
    tm = _tile(M, 512, 8)
    return pl.pallas_call(
        _softmax_kernel,
        out_shape=jax.ShapeDtypeStruct((M, C), jnp.float32),
        grid=(M // tm,),
        in_specs=[pl.BlockSpec((tm, C), lambda i: (i, 0))],
        out_specs=pl.BlockSpec((tm, C), lambda i: (i, 0)),
        compiler_params=pltpu.CompilerParams(dimension_semantics=(_PAR,)),
    )(x)


# ------------------------------ model glue ------------------------------

def multi_head_attention(x2d, lp, mask_bias, B, S, heads):
    D = x2d.shape[1]
    # Fused LayerNorm + fused (D,3D) QKV projection (q/k/v linears are bias-free);
    # the 1/sqrt(d_k) scale is pre-folded into the Q weight columns.
    qkv = pallas_ln_qkv(x2d, lp["ln1_g"], lp["ln1_b"], lp["wqkv"])     # (M,3D) bf16
    o = pallas_attention(qkv.reshape(B, S, 3 * D), mask_bias, heads)   # (B,S,D) bf16
    # output projection FC with the residual (x) fused into the last K step
    return pallas_linear(o.reshape(B * S, D), lp["wo"], lp["bo"], residual=x2d)


def encoder_layer(x, lp, mask_bias, heads):
    # norm_first=True path; dropouts are identity; residual adds are fused in-kernel.
    B, S, D = x.shape
    x2d = x.reshape(B * S, D)
    x2d = multi_head_attention(x2d, lp, mask_bias, B, S, heads)
    x2d = pallas_ln_ffn(x2d, lp["ln2_g"], lp["ln2_b"],
                        lp["w1"], lp["b1"], lp["w2"], lp["b2"])
    return x2d.reshape(B, S, D)


def sinusoidal_pe(S, D):
    pos = jnp.arange(S, dtype=jnp.float32)[:, None]
    i = jnp.arange(0, D, 2, dtype=jnp.float32)[None, :]
    ang = pos / jnp.power(10000.0, i / D)
    pe = jnp.zeros((S, D), jnp.float32)
    pe = pe.at[:, 0::2].set(jnp.sin(ang))
    pe = pe.at[:, 1::2].set(jnp.cos(ang))
    return pe


def bert_forward(prep, src, mask, pe, *, heads, m, mod="rec", multclass=False):
    B, S, _ = src.shape
    D = prep["norm_g"].shape[0]

    # Encoder.fe — FE class is NOT defined in the reference source.
    # TODO(synk): FE internals unavailable; modeled as Linear(input_size, d_model) + ReLU (isrelu=1).
    x = pallas_linear(src.astype(jnp.float32).reshape(B * S, -1),
                      prep["fe_w"], prep["fe_b"], act="relu")
    # `pe` is a caller-supplied module in PyTorch; precomputed additive sinusoidal PE.
    x = x.reshape(B, S, D) + pe[None]

    # attn mask -> additive f32 bias once per forward (0 keep / -1e9 masked).
    mask_bias = jnp.where(mask == 0, -1e9, 0.0).astype(jnp.float32)

    for lp in prep["layers"]:
        x = encoder_layer(x, lp, mask_bias, heads)

    xf = x.reshape(B * S, D)
    if mod == "rec":
        if not multclass:
            # fused final LayerNorm + out Linear + pair softmax (lane-dense layout)
            o = pallas_ln_head_pair(xf, prep["norm_g"], prep["norm_b"],
                                    prep["out_w"], prep["out_b"], m)
            # (B*S, [class0 x m | class1 x m]) -> (B, S*m, 2) matching PyTorch view.
            return o.reshape(B, S, 2, m).transpose(0, 1, 3, 2).reshape(B, S * m, 2)
        xn = pallas_layernorm(xf, prep["norm_g"], prep["norm_b"])
        o = pallas_linear(xn, prep["out_w"], prep["out_b"])
        return pallas_softmax_lastdim(o).reshape(B, S, -1)
    else:  # mod == 'trx' path (not exercised in __main__)
        xn = pallas_layernorm(xf, prep["norm_g"], prep["norm_b"])
        o = pallas_linear(xn, prep["out1_w"], prep["out1_b"])
        o = pallas_linear(o, prep["out2_w"], prep["out2_b"])
        return o.reshape(B, S, 1)


# --------------------------- deterministic init ---------------------------

def init_params(key, *, input_size, d_model, n_layers, heads, m,
                mod="rec", multclass=False):
    keys = iter(jax.random.split(key, 16 + n_layers * 8))

    def nrm(shape):
        return 0.02 * jax.random.normal(next(keys), shape, dtype=jnp.float32)

    d_ff = 4 * d_model
    params = {
        "fe_w": nrm((input_size, d_model)),
        "fe_b": jnp.zeros((d_model,), jnp.float32),
        "norm_g": jnp.ones((d_model,), jnp.float32),
        "norm_b": jnp.zeros((d_model,), jnp.float32),
        "layers": [],
    }
    for _ in range(n_layers):
        params["layers"].append({
            "ln1_g": jnp.ones((d_model,), jnp.float32),
            "ln1_b": jnp.zeros((d_model,), jnp.float32),
            "ln2_g": jnp.ones((d_model,), jnp.float32),
            "ln2_b": jnp.zeros((d_model,), jnp.float32),
            "wq": nrm((d_model, d_model)),
            "wk": nrm((d_model, d_model)),
            "wv": nrm((d_model, d_model)),
            "wo": nrm((d_model, d_model)),
            "bo": jnp.zeros((d_model,), jnp.float32),
            "w1": nrm((d_model, d_ff)),
            "b1": jnp.zeros((d_ff,), jnp.float32),
            "w2": nrm((d_ff, d_model)),
            "b2": jnp.zeros((d_model,), jnp.float32),
        })
    if mod == "rec":
        out_dim = (2 ** m) if multclass else (2 * m)
        params["out_w"] = nrm((d_model, out_dim))
        params["out_b"] = jnp.zeros((out_dim,), jnp.float32)
    else:
        dr = d_model // 4
        params["out1_w"] = nrm((d_model, dr))
        params["out1_b"] = jnp.zeros((dr,), jnp.float32)
        params["out2_w"] = nrm((dr, 1))
        params["out2_b"] = jnp.zeros((1,), jnp.float32)
    return params


def prepare_params(params, *, m, heads, mod="rec", multclass=False):
    """Kernel-ready params: fused QKV weight (with 1/sqrt(d_k) folded into the Q
    columns), bf16 matmul weights, and the rec-head columns permuted to
    [class-0 | class-1] for the lane-dense pair softmax."""
    bf = lambda a: a.astype(jnp.bfloat16)
    d_model = params["norm_g"].shape[0]
    scale = 1.0 / math.sqrt(d_model // heads)
    prep = {
        "fe_w": bf(params["fe_w"]), "fe_b": params["fe_b"],
        "norm_g": params["norm_g"], "norm_b": params["norm_b"],
        "layers": [],
    }
    for lp in params["layers"]:
        prep["layers"].append({
            "ln1_g": lp["ln1_g"], "ln1_b": lp["ln1_b"],
            "ln2_g": lp["ln2_g"], "ln2_b": lp["ln2_b"],
            "wqkv": bf(jnp.concatenate([lp["wq"] * scale, lp["wk"], lp["wv"]],
                                       axis=1)),
            "wo": bf(lp["wo"]), "bo": lp["bo"],
            "w1": bf(lp["w1"]), "b1": lp["b1"],
            "w2": bf(lp["w2"]), "b2": lp["b2"],
        })
    if mod == "rec" and not multclass:
        perm = jnp.concatenate([jnp.arange(0, 2 * m, 2), jnp.arange(1, 2 * m, 2)])
        prep["out_w"] = bf(params["out_w"][:, perm])
        prep["out_b"] = params["out_b"][perm]
    elif mod == "rec":
        prep["out_w"] = bf(params["out_w"]); prep["out_b"] = params["out_b"]
    else:
        prep["out1_w"] = bf(params["out1_w"]); prep["out1_b"] = params["out1_b"]
        prep["out2_w"] = bf(params["out2_w"]); prep["out2_b"] = params["out2_b"]
    return prep


# --------------------------------- main ---------------------------------

if __name__ == "__main__":
    B, S = 2, 8
    input_size = 4
    d_model = 32
    n_layers = 2
    heads = 4
    m = 4

    key = jax.random.PRNGKey(0)
    k_params, k_src = jax.random.split(key)
    params = init_params(k_params, input_size=input_size, d_model=d_model,
                         n_layers=n_layers, heads=heads, m=m,
                         mod="rec", multclass=False)
    prep = prepare_params(params, m=m, heads=heads, mod="rec", multclass=False)
    pe = sinusoidal_pe(S, d_model)          # hoisted: computed once per shape

    src = jax.random.normal(k_src, (B, S, input_size), dtype=jnp.float32)
    # attn_mask (B, S, S): 1 = attend, 0 = masked (matches masked_fill(mask==0, -1e9)).
    mask = jnp.ones((B, S, S), jnp.float32).at[:, :, -1].set(0.0)

    fwd = jax.jit(partial(bert_forward, heads=heads, m=m, mod="rec", multclass=False))
    out = jax.block_until_ready(fwd(prep, src, mask, pe))

    assert out.shape == (B, S * m, 2), out.shape
    assert bool(jnp.all(jnp.isfinite(out)))
    # each pair softmax sums to 1
    assert bool(jnp.allclose(jnp.sum(out, axis=-1), 1.0, atol=1e-5))
    print("KERNEL_OK")
</pallas_src>

<mosaic_0001>
module attributes {stable_mosaic.version = 11 : i64} {
  func.func @_linear_kernel(%arg0: i32, %arg1: i32, %arg2: i32, %arg3: memref<16x4xf32, #tpu.memory_space<vmem>>, %arg4: memref<4x32xbf16, #tpu.memory_space<vmem>>, %arg5: memref<1x32xf32, #tpu.memory_space<vmem>>, %arg6: memref<16x32xf32, #tpu.memory_space<vmem>>, %arg7: memref<16x32xf32, #tpu.memory_space<vmem>>) attributes {dimension_semantics = [#tpu.dimension_semantics<parallel>, #tpu.dimension_semantics<parallel>, #tpu.dimension_semantics<arbitrary>], iteration_bounds = array<i64: 1, 1, 1>, scalar_prefetch = 0 : i64, scratch_operands = 1 : i64, tpu.core_type = #tpu.core_type<tc>, window_params = [{transform_indices = @transform_0, window_bounds = array<i64: 16, 4>}, {transform_indices = @transform_1, window_bounds = array<i64: 4, 32>}, {transform_indices = @transform_2, window_bounds = array<i64: 1, 32>}, {transform_indices = @transform_3, window_bounds = array<i64: 16, 32>}]} {
    %c0_i32 = arith.constant 0 : i32
    %0 = arith.cmpi eq, %arg2, %c0_i32 : i32
    %1 = arith.extui %0 : i1 to i32
    %c0_i32_0 = arith.constant 0 : i32
    %2 = arith.cmpi ne, %1, %c0_i32_0 : i32
    scf.if %2 {
      %cst_10 = arith.constant 0.000000e+00 : f32
      %13 = vector.broadcast %cst_10 : f32 to vector<16x32xf32>
      %c0_11 = arith.constant 0 : index
      %c0_12 = arith.constant 0 : index
      %14 = vector.load %arg7[%c0_11, %c0_12] : memref<16x32xf32, #tpu.memory_space<vmem>>, vector<16x32xf32>
      tpu.vector_store %arg7[%c0_11, %c0_12], %13 {strides = array<i32>} : memref<16x32xf32, #tpu.memory_space<vmem>>, vector<16x32xf32>,
    } else {
    }
    %c0 = arith.constant 0 : index
    %c0_1 = arith.constant 0 : index
    %3 = vector.load %arg7[%c0, %c0_1] : memref<16x32xf32, #tpu.memory_space<vmem>>, vector<16x32xf32>
    %c0_2 = arith.constant 0 : index
    %c0_3 = arith.constant 0 : index
    %4 = vector.load %arg3[%c0_2, %c0_3] : memref<16x4xf32, #tpu.memory_space<vmem>>, vector<16x4xf32>
    %5 = arith.truncf %4 : vector<16x4xf32> to vector<16x4xbf16>
    %c0_4 = arith.constant 0 : index
    %c0_5 = arith.constant 0 : index
    %6 = vector.load %arg4[%c0_4, %c0_5] : memref<4x32xbf16, #tpu.memory_space<vmem>>, vector<4x32xbf16>
    %cst = arith.constant dense<0.000000e+00> : vector<16x32xf32>
    %7 = tpu.matmul %5, %6, %cst {dimension_numbers = #tpu.dot_dimension_numbers<[1], [0], [0], [1], [0, 0, 1, 1], [], []>} : vector<16x4xbf16>, vector<4x32xbf16>, vector<16x32xf32> -> vector<16x32xf32>
    %8 = arith.addf %3, %7 : vector<16x32xf32>
    %c0_6 = arith.constant 0 : index
    %c0_7 = arith.constant 0 : index
    %9 = vector.load %arg7[%c0_6, %c0_7] : memref<16x32xf32, #tpu.memory_space<vmem>>, vector<16x32xf32>
    tpu.vector_store %arg7[%c0_6, %c0_7], %8 {strides = array<i32>} : memref<16x32xf32, #tpu.memory_space<vmem>>, vector<16x32xf32>,
    %c0_i32_8 = arith.constant 0 : i32
    %10 = arith.cmpi eq, %arg2, %c0_i32_8 : i32
    %11 = arith.extui %10 : i1 to i32
    %c0_i32_9 = arith.constant 0 : i32
    %12 = arith.cmpi ne, %11, %c0_i32_9 : i32
    scf.if %12 {
      %c0_10 = arith.constant 0 : index
      %c0_11 = arith.constant 0 : index
      %13 = vector.load %arg7[%c0_10, %c0_11] : memref<16x32xf32, #tpu.memory_space<vmem>>, vector<16x32xf32>
      %c0_12 = arith.constant 0 : index
      %c0_13 = arith.constant 0 : index
      %14 = vector.load %arg5[%c0_12, %c0_13] : memref<1x32xf32, #tpu.memory_space<vmem>>, vector<1x32xf32>
      %15 = vector.broadcast %14 : vector<1x32xf32> to vector<16x32xf32>
      %16 = arith.addf %13, %15 : vector<16x32xf32>
      %cst_14 = arith.constant 0.000000e+00 : f32
      %17 = vector.broadcast %cst_14 : f32 to vector<16x32xf32>
      %18 = arith.maximumf %16, %17 : vector<16x32xf32>
      %c0_15 = arith.constant 0 : index
      %c0_16 = arith.constant 0 : index
      %19 = vector.load %arg6[%c0_15, %c0_16] : memref<16x32xf32, #tpu.memory_space<vmem>>, vector<16x32xf32>
      tpu.vector_store %arg6[%c0_15, %c0_16], %18 {strides = array<i32>} : memref<16x32xf32, #tpu.memory_space<vmem>>, vector<16x32xf32>,
    } else {
    }
    return
  }
  func.func @transform_0(%arg0: i32, %arg1: i32, %arg2: i32) -> (i32, i32) {
    %c0_i32 = arith.constant 0 : i32
    return %arg0, %arg2 : i32, i32
  }
  func.func @transform_1(%arg0: i32, %arg1: i32, %arg2: i32) -> (i32, i32) {
    %c0_i32 = arith.constant 0 : i32
    return %arg2, %arg1 : i32, i32
  }
  func.func @transform_2(%arg0: i32, %arg1: i32, %arg2: i32) -> (i32, i32) {
    %c0_i32 = arith.constant 0 : i32
    %c0_i32_0 = arith.constant 0 : i32
    return %c0_i32, %arg1 : i32, i32
  }
  func.func @transform_3(%arg0: i32, %arg1: i32, %arg2: i32) -> (i32, i32) {
    %c0_i32 = arith.constant 0 : i32
    return %arg0, %arg1 : i32, i32
  }
}

module attributes {stable_mosaic.version = 11 : i64} {
  func.func @_ln_qkv_kernel(%arg0: i32, %arg1: i32, %arg2: memref<16x32xf32, #tpu.memory_space<vmem>>, %arg3: memref<1x32xf32, #tpu.memory_space<vmem>>, %arg4: memref<1x32xf32, #tpu.memory_space<vmem>>, %arg5: memref<32x96xbf16, #tpu.memory_space<vmem>>, %arg6: memref<16x96xbf16, #tpu.memory_space<vmem>>, %arg7: memref<16x32xbf16, #tpu.memory_space<vmem>>) attributes {dimension_semantics = [#tpu.dimension_semantics<parallel>, #tpu.dimension_semantics<arbitrary>], iteration_bounds = array<i64: 1, 1>, scalar_prefetch = 0 : i64, scratch_operands = 1 : i64, tpu.core_type = #tpu.core_type<tc>, window_params = [{transform_indices = @transform_0, window_bounds = array<i64: 16, 32>}, {pipeline_mode = #tpu.pipeline_mode<synchronous>, transform_indices = @transform_1, window_bounds = array<i64: 1, 32>}, {pipeline_mode = #tpu.pipeline_mode<synchronous>, transform_indices = @transform_2, window_bounds = array<i64: 1, 32>}, {transform_indices = @transform_3, window_bounds = array<i64: 32, 96>}, {transform_indices = @transform_4, window_bounds = array<i64: 16, 96>}]} {
    %c0_i32 = arith.constant 0 : i32
    %0 = arith.cmpi eq, %arg1, %c0_i32 : i32
    %1 = arith.extui %0 : i1 to i32
    %c0_i32_0 = arith.constant 0 : i32
    %2 = arith.cmpi ne, %1, %c0_i32_0 : i32
    scf.if %2 {
      %c0_6 = arith.constant 0 : index
      %c0_7 = arith.constant 0 : index
      %8 = vector.load %arg2[%c0_6, %c0_7] : memref<16x32xf32, #tpu.memory_space<vmem>>, vector<16x32xf32>
      %c0_8 = arith.constant 0 : index
      %c0_9 = arith.constant 0 : index
      %9 = vector.load %arg3[%c0_8, %c0_9] : memref<1x32xf32, #tpu.memory_space<vmem>>, vector<1x32xf32>
      %c0_10 = arith.constant 0 : index
      %c0_11 = arith.constant 0 : index
      %10 = vector.load %arg4[%c0_10, %c0_11] : memref<1x32xf32, #tpu.memory_space<vmem>>, vector<1x32xf32>
      %cst_12 = arith.constant dense<0.000000e+00> : vector<16xf32>
      %11 = vector.multi_reduction <add>, %8, %cst_12 [1] : vector<16x32xf32> to vector<16xf32>
      %12 = vector.shape_cast %11 : vector<16xf32> to vector<16x1xf32>
      %cst_13 = arith.constant 3.200000e+01 : f32
      %13 = vector.broadcast %cst_13 : f32 to vector<16x1xf32>
      %14 = arith.divf %12, %13 : vector<16x1xf32>
      %15 = vector.broadcast %14 : vector<16x1xf32> to vector<16x32xf32>
      %16 = arith.subf %8, %15 : vector<16x32xf32>
      %17 = arith.mulf %16, %16 : vector<16x32xf32>
      %cst_14 = arith.constant dense<0.000000e+00> : vector<16xf32>
      %18 = vector.multi_reduction <add>, %17, %cst_14 [1] : vector<16x32xf32> to vector<16xf32>
      %19 = vector.shape_cast %18 : vector<16xf32> to vector<16x1xf32>
      %cst_15 = arith.constant 3.200000e+01 : f32
      %20 = vector.broadcast %cst_15 : f32 to vector<16x1xf32>
      %21 = arith.divf %19, %20 : vector<16x1xf32>
      %22 = vector.broadcast %14 : vector<16x1xf32> to vector<16x32xf32>
      %23 = arith.subf %8, %22 : vector<16x32xf32>
      %cst_16 = arith.constant 9.99999974E-6 : f32
      %24 = vector.broadcast %cst_16 : f32 to vector<16x1xf32>
      %25 = arith.addf %21, %24 : vector<16x1xf32>
      %26 = math.rsqrt %25 : vector<16x1xf32>
      %27 = vector.broadcast %26 : vector<16x1xf32> to vector<16x32xf32>
      %28 = arith.mulf %23, %27 : vector<16x32xf32>
      %29 = vector.broadcast %9 : vector<1x32xf32> to vector<16x32xf32>
      %30 = arith.mulf %28, %29 : vector<16x32xf32>
      %31 = vector.broadcast %10 : vector<1x32xf32> to vector<16x32xf32>
      %32 = arith.addf %30, %31 : vector<16x32xf32>
      %33 = arith.truncf %32 : vector<16x32xf32> to vector<16x32xbf16>
      %c0_17 = arith.constant 0 : index
      %c0_18 = arith.constant 0 : index
      %34 = vector.load %arg7[%c0_17, %c0_18] : memref<16x32xbf16, #tpu.memory_space<vmem>>, vector<16x32xbf16>
      tpu.vector_store %arg7[%c0_17, %c0_18], %33 {strides = array<i32>} : memref<16x32xbf16, #tpu.memory_space<vmem>>, vector<16x32xbf16>,
    } else {
    }
    %c0 = arith.constant 0 : index
    %c0_1 = arith.constant 0 : index
    %3 = vector.load %arg7[%c0, %c0_1] : memref<16x32xbf16, #tpu.memory_space<vmem>>, vector<16x32xbf16>
    %c0_2 = arith.constant 0 : index
    %c0_3 = arith.constant 0 : index
    %4 = vector.load %arg5[%c0_2, %c0_3] : memref<32x96xbf16, #tpu.memory_space<vmem>>, vector<32x96xbf16>
    %cst = arith.constant dense<0.000000e+00> : vector<16x96xf32>
    %5 = tpu.matmul %3, %4, %cst {dimension_numbers = #tpu.dot_dimension_numbers<[1], [0], [0], [1], [0, 0, 1, 1], [], []>} : vector<16x32xbf16>, vector<32x96xbf16>, vector<16x96xf32> -> vector<16x96xf32>
    %6 = arith.truncf %5 : vector<16x96xf32> to vector<16x96xbf16>
    %c0_4 = arith.constant 0 : index
    %c0_5 = arith.constant 0 : index
    %7 = vector.load %arg6[%c0_4, %c0_5] : memref<16x96xbf16, #tpu.memory_space<vmem>>, vector<16x96xbf16>
    tpu.vector_store %arg6[%c0_4, %c0_5], %6 {strides = array<i32>} : memref<16x96xbf16, #tpu.memory_space<vmem>>, vector<16x96xbf16>,
    return
  }
  func.func @transform_0(%arg0: i32, %arg1: i32) -> (i32, i32) {
    %c0_i32 = arith.constant 0 : i32
    %c0_i32_0 = arith.constant 0 : i32
    return %arg0, %c0_i32 : i32, i32
  }
  func.func @transform_1(%arg0: i32, %arg1: i32) -> (i32, i32) {
    %c0_i32 = arith.constant 0 : i32
    %c0_i32_0 = arith.constant 0 : i32
    %c0_i32_1 = arith.constant 0 : i32
    return %c0_i32, %c0_i32_0 : i32, i32
  }
  func.func @transform_2(%arg0: i32, %arg1: i32) -> (i32, i32) {
    %c0_i32 = arith.constant 0 : i32
    %c0_i32_0 = arith.constant 0 : i32
    %c0_i32_1 = arith.constant 0 : i32
    return %c0_i32, %c0_i32_0 : i32, i32
  }
  func.func @transform_3(%arg0: i32, %arg1: i32) -> (i32, i32) {
    %c0_i32 = arith.constant 0 : i32
    %c0_i32_0 = arith.constant 0 : i32
    return %c0_i32, %arg1 : i32, i32
  }
  func.func @transform_4(%arg0: i32, %arg1: i32) -> (i32, i32) {
    %c0_i32 = arith.constant 0 : i32
    return %arg0, %arg1 : i32, i32
  }
}

module attributes {stable_mosaic.version = 11 : i64} {
  func.func @_attention_kernel(%arg0: i32, %arg1: i32, %arg2: memref<1x8x96xbf16, #tpu.memory_space<vmem>>, %arg3: memref<1x8x96xbf16, #tpu.memory_space<vmem>>, %arg4: memref<1x8x8xf32, #tpu.memory_space<vmem>>, %arg5: memref<1x8x32xbf16, #tpu.memory_space<vmem>>) attributes {dimension_semantics = [#tpu.dimension_semantics<parallel>, #tpu.dimension_semantics<parallel>], iteration_bounds = array<i64: 2, 1>, scalar_prefetch = 0 : i64, scratch_operands = 0 : i64, tpu.core_type = #tpu.core_type<tc>, window_params = [{transform_indices = @transform_0, window_bounds = array<i64: 1, 8, 96>}, {transform_indices = @transform_1, window_bounds = array<i64: 1, 8, 96>}, {transform_indices = @transform_2, window_bounds = array<i64: 1, 8, 8>}, {transform_indices = @transform_3, window_bounds = array<i64: 1, 8, 32>}]} {
    %c0 = arith.constant 0 : index
    %c0_0 = arith.constant 0 : index
    %c0_1 = arith.constant 0 : index
    %0 = vector.load %arg2[%c0, %c0_0, %c0_1] : memref<1x8x96xbf16, #tpu.memory_space<vmem>>, vector<1x8x96xbf16>
    %1 = vector.shape_cast %0 : vector<1x8x96xbf16> to vector<8x96xbf16>
    %c0_2 = arith.constant 0 : index
    %c0_3 = arith.constant 0 : index
    %c0_4 = arith.constant 0 : index
    %2 = vector.load %arg3[%c0_2, %c0_3, %c0_4] : memref<1x8x96xbf16, #tpu.memory_space<vmem>>, vector<1x8x96xbf16>
    %3 = vector.shape_cast %2 : vector<1x8x96xbf16> to vector<8x96xbf16>
    %c0_5 = arith.constant 0 : index
    %c0_6 = arith.constant 0 : index
    %c0_7 = arith.constant 0 : index
    %4 = vector.load %arg4[%c0_5, %c0_6, %c0_7] : memref<1x8x8xf32, #tpu.memory_space<vmem>>, vector<1x8x8xf32>
    %5 = vector.shape_cast %4 : vector<1x8x8xf32> to vector<8x8xf32>
    %6 = vector.extract_strided_slice %1 {offsets = [0, 0], sizes = [8, 8], strides = [1, 1]} : vector<8x96xbf16> to vector<8x8xbf16>
    %7 = vector.extract_strided_slice %3 {offsets = [0, 32], sizes = [8, 8], strides = [1, 1]} : vector<8x96xbf16> to vector<8x8xbf16>
    %8 = vector.extract_strided_slice %3 {offsets = [0, 64], sizes = [8, 8], strides = [1, 1]} : vector<8x96xbf16> to vector<8x8xbf16>
    %cst = arith.constant dense<0.000000e+00> : vector<8x8xf32>
    %9 = tpu.matmul %6, %7, %cst {dimension_numbers = #tpu.dot_dimension_numbers<[1], [1], [0], [0], [0, 0, 1, 0], [], []>} : vector<8x8xbf16>, vector<8x8xbf16>, vector<8x8xf32> -> vector<8x8xf32>
    %10 = arith.addf %9, %5 : vector<8x8xf32>
    %cst_8 = arith.constant dense<0xFF800000> : vector<8xf32>
    %11 = vector.multi_reduction <maximumf>, %10, %cst_8 [1] : vector<8x8xf32> to vector<8xf32>
    %12 = vector.shape_cast %11 : vector<8xf32> to vector<8x1xf32>
    %13 = vector.broadcast %12 : vector<8x1xf32> to vector<8x8xf32>
    %14 = arith.subf %10, %13 : vector<8x8xf32>
    %15 = math.exp %14 : vector<8x8xf32>
    %cst_9 = arith.constant dense<0.000000e+00> : vector<8xf32>
    %16 = vector.multi_reduction <add>, %15, %cst_9 [1] : vector<8x8xf32> to vector<8xf32>
    %17 = vector.shape_cast %16 : vector<8xf32> to vector<8x1xf32>
    %18 = tpu.reciprocal %17 {approx = true} : vector<8x1xf32> -> vector<8x1xf32>
    %19 = vector.broadcast %18 : vector<8x1xf32> to vector<8x8xf32>
    %20 = arith.mulf %15, %19 : vector<8x8xf32>
    %21 = arith.truncf %20 : vector<8x8xf32> to vector<8x8xbf16>
    %cst_10 = arith.constant dense<0.000000e+00> : vector<8x8xf32>
    %22 = tpu.matmul %21, %8, %cst_10 {dimension_numbers = #tpu.dot_dimension_numbers<[1], [0], [0], [1], [0, 0, 1, 1], [], []>} : vector<8x8xbf16>, vector<8x8xbf16>, vector<8x8xf32> -> vector<8x8xf32>
    %23 = vector.extract_strided_slice %1 {offsets = [0, 8], sizes = [8, 8], strides = [1, 1]} : vector<8x96xbf16> to vector<8x8xbf16>
    %24 = vector.extract_strided_slice %3 {offsets = [0, 40], sizes = [8, 8], strides = [1, 1]} : vector<8x96xbf16> to vector<8x8xbf16>
    %25 = vector.extract_strided_slice %3 {offsets = [0, 72], sizes = [8, 8], strides = [1, 1]} : vector<8x96xbf16> to vector<8x8xbf16>
    %cst_11 = arith.constant dense<0.000000e+00> : vector<8x8xf32>
    %26 = tpu.matmul %23, %24, %cst_11 {dimension_numbers = #tpu.dot_dimension_numbers<[1], [1], [0], [0], [0, 0, 1, 0], [], []>} : vector<8x8xbf16>, vector<8x8xbf16>, vector<8x8xf32> -> vector<8x8xf32>
    %27 = arith.addf %26, %5 : vector<8x8xf32>
    %cst_12 = arith.constant dense<0xFF800000> : vector<8xf32>
    %28 = vector.multi_reduction <maximumf>, %27, %cst_12 [1] : vector<8x8xf32> to vector<8xf32>
    %29 = vector.shape_cast %28 : vector<8xf32> to vector<8x1xf32>
    %30 = vector.broadcast %29 : vector<8x1xf32> to vector<8x8xf32>
    %31 = arith.subf %27, %30 : vector<8x8xf32>
    %32 = math.exp %31 : vector<8x8xf32>
    %cst_13 = arith.constant dense<0.000000e+00> : vector<8xf32>
    %33 = vector.multi_reduction <add>, %32, %cst_13 [1] : vector<8x8xf32> to vector<8xf32>
    %34 = vector.shape_cast %33 : vector<8xf32> to vector<8x1xf32>
    %35 = tpu.reciprocal %34 {approx = true} : vector<8x1xf32> -> vector<8x1xf32>
    %36 = vector.broadcast %35 : vector<8x1xf32> to vector<8x8xf32>
    %37 = arith.mulf %32, %36 : vector<8x8xf32>
    %38 = arith.truncf %37 : vector<8x8xf32> to vector<8x8xbf16>
    %cst_14 = arith.constant dense<0.000000e+00> : vector<8x8xf32>
    %39 = tpu.matmul %38, %25, %cst_14 {dimension_numbers = #tpu.dot_dimension_numbers<[1], [0], [0], [1], [0, 0, 1, 1], [], []>} : vector<8x8xbf16>, vector<8x8xbf16>, vector<8x8xf32> -> vector<8x8xf32>
    %40 = vector.extract_strided_slice %1 {offsets = [0, 16], sizes = [8, 8], strides = [1, 1]} : vector<8x96xbf16> to vector<8x8xbf16>
    %41 = vector.extract_strided_slice %3 {offsets = [0, 48], sizes = [8, 8], strides = [1, 1]} : vector<8x96xbf16> to vector<8x8xbf16>
    %42 = vector.extract_strided_slice %3 {offsets = [0, 80], sizes = [8, 8], strides = [1, 1]} : vector<8x96xbf16> to vector<8x8xbf16>
    %cst_15 = arith.constant dense<0.000000e+00> : vector<8x8xf32>
    %43 = tpu.matmul %40, %41, %cst_15 {dimension_numbers = #tpu.dot_dimension_numbers<[1], [1], [0], [0], [0, 0, 1, 0], [], []>} : vector<8x8xbf16>, vector<8x8xbf16>, vector<8x8xf32> -> vector<8x8xf32>
    %44 = arith.addf %43, %5 : vector<8x8xf32>
    %cst_16 = arith.constant dense<0xFF800000> : vector<8xf32>
    %45 = vector.multi_reduction <maximumf>, %44, %cst_16 [1] : vector<8x8xf32> to vector<8xf32>
    %46 = vector.shape_cast %45 : vector<8xf32> to vector<8x1xf32>
    %47 = vector.broadcast %46 : vector<8x1xf32> to vector<8x8xf32>
    %48 = arith.subf %44, %47 : vector<8x8xf32>
    %49 = math.exp %48 : vector<8x8xf32>
    %cst_17 = arith.constant dense<0.000000e+00> : vector<8xf32>
    %50 = vector.multi_reduction <add>, %49, %cst_17 [1] : vector<8x8xf32> to vector<8xf32>
    %51 = vector.shape_cast %50 : vector<8xf32> to vector<8x1xf32>
    %52 = tpu.reciprocal %51 {approx = true} : vector<8x1xf32> -> vector<8x1xf32>
    %53 = vector.broadcast %52 : vector<8x1xf32> to vector<8x8xf32>
    %54 = arith.mulf %49, %53 : vector<8x8xf32>
    %55 = arith.truncf %54 : vector<8x8xf32> to vector<8x8xbf16>
    %cst_18 = arith.constant dense<0.000000e+00> : vector<8x8xf32>
    %56 = tpu.matmul %55, %42, %cst_18 {dimension_numbers = #tpu.dot_dimension_numbers<[1], [0], [0], [1], [0, 0, 1, 1], [], []>} : vector<8x8xbf16>, vector<8x8xbf16>, vector<8x8xf32> -> vector<8x8xf32>
    %57 = vector.extract_strided_slice %1 {offsets = [0, 24], sizes = [8, 8], strides = [1, 1]} : vector<8x96xbf16> to vector<8x8xbf16>
    %58 = vector.extract_strided_slice %3 {offsets = [0, 56], sizes = [8, 8], strides = [1, 1]} : vector<8x96xbf16> to vector<8x8xbf16>
    %59 = vector.extract_strided_slice %3 {offsets = [0, 88], sizes = [8, 8], strides = [1, 1]} : vector<8x96xbf16> to vector<8x8xbf16>
    %cst_19 = arith.constant dense<0.000000e+00> : vector<8x8xf32>
    %60 = tpu.matmul %57, %58, %cst_19 {dimension_numbers = #tpu.dot_dimension_numbers<[1], [1], [0], [0], [0, 0, 1, 0], [], []>} : vector<8x8xbf16>, vector<8x8xbf16>, vector<8x8xf32> -> vector<8x8xf32>
    %61 = arith.addf %60, %5 : vector<8x8xf32>
    %cst_20 = arith.constant dense<0xFF800000> : vector<8xf32>
    %62 = vector.multi_reduction <maximumf>, %61, %cst_20 [1] : vector<8x8xf32> to vector<8xf32>
    %63 = vector.shape_cast %62 : vector<8xf32> to vector<8x1xf32>
    %64 = vector.broadcast %63 : vector<8x1xf32> to vector<8x8xf32>
    %65 = arith.subf %61, %64 : vector<8x8xf32>
    %66 = math.exp %65 : vector<8x8xf32>
    %cst_21 = arith.constant dense<0.000000e+00> : vector<8xf32>
    %67 = vector.multi_reduction <add>, %66, %cst_21 [1] : vector<8x8xf32> to vector<8xf32>
    %68 = vector.shape_cast %67 : vector<8xf32> to vector<8x1xf32>
    %69 = tpu.reciprocal %68 {approx = true} : vector<8x1xf32> -> vector<8x1xf32>
    %70 = vector.broadcast %69 : vector<8x1xf32> to vector<8x8xf32>
    %71 = arith.mulf %66, %70 : vector<8x8xf32>
    %72 = arith.truncf %71 : vector<8x8xf32> to vector<8x8xbf16>
    %cst_22 = arith.constant dense<0.000000e+00> : vector<8x8xf32>
    %73 = tpu.matmul %72, %59, %cst_22 {dimension_numbers = #tpu.dot_dimension_numbers<[1], [0], [0], [1], [0, 0, 1, 1], [], []>} : vector<8x8xbf16>, vector<8x8xbf16>, vector<8x8xf32> -> vector<8x8xf32>
    %74 = tpu.concatenate %22, %39, %56, %73 in 1 : vector<8x8xf32>, vector<8x8xf32>, vector<8x8xf32>, vector<8x8xf32> -> vector<8x32xf32>
    %75 = arith.truncf %74 : vector<8x32xf32> to vector<8x32xbf16>
    %c0_23 = arith.constant 0 : index
    %c0_24 = arith.constant 0 : index
    %c0_25 = arith.constant 0 : index
    %76 = vector.load %arg5[%c0_23, %c0_24, %c0_25] : memref<1x8x32xbf16, #tpu.memory_space<vmem>>, vector<1x8x32xbf16>
    %77 = vector.shape_cast %76 : vector<1x8x32xbf16> to vector<8x32xbf16>
    %78 = vector.shape_cast %75 : vector<8x32xbf16> to vector<1x8x32xbf16>
    tpu.vector_store %arg5[%c0_23, %c0_24, %c0_25], %78 {strides = array<i32>} : memref<1x8x32xbf16, #tpu.memory_space<vmem>>, vector<1x8x32xbf16>,
    return
  }
  func.func @transform_0(%arg0: i32, %arg1: i32) -> (i32, i32, i32) {
    %c0_i32 = arith.constant 0 : i32
    %c0_i32_0 = arith.constant 0 : i32
    return %arg0, %arg1, %c0_i32 : i32, i32, i32
  }
  func.func @transform_1(%arg0: i32, %arg1: i32) -> (i32, i32, i32) {
    %c0_i32 = arith.constant 0 : i32
    %c0_i32_0 = arith.constant 0 : i32
    %c0_i32_1 = arith.constant 0 : i32
    return %arg0, %c0_i32, %c0_i32_0 : i32, i32, i32
  }
  func.func @transform_2(%arg0: i32, %arg1: i32) -> (i32, i32, i32) {
    %c0_i32 = arith.constant 0 : i32
    %c0_i32_0 = arith.constant 0 : i32
    return %arg0, %arg1, %c0_i32 : i32, i32, i32
  }
  func.func @transform_3(%arg0: i32, %arg1: i32) -> (i32, i32, i32) {
    %c0_i32 = arith.constant 0 : i32
    %c0_i32_0 = arith.constant 0 : i32
    return %arg0, %arg1, %c0_i32 : i32, i32, i32
  }
}

module attributes {stable_mosaic.version = 11 : i64} {
  func.func @_linear_kernel(%arg0: i32, %arg1: i32, %arg2: i32, %arg3: memref<16x32xbf16, #tpu.memory_space<vmem>>, %arg4: memref<32x32xbf16, #tpu.memory_space<vmem>>, %arg5: memref<1x32xf32, #tpu.memory_space<vmem>>, %arg6: memref<16x32xf32, #tpu.memory_space<vmem>>, %arg7: memref<16x32xf32, #tpu.memory_space<vmem>>, %arg8: memref<16x32xf32, #tpu.memory_space<vmem>>) attributes {dimension_semantics = [#tpu.dimension_semantics<parallel>, #tpu.dimension_semantics<parallel>, #tpu.dimension_semantics<arbitrary>], iteration_bounds = array<i64: 1, 1, 1>, scalar_prefetch = 0 : i64, scratch_operands = 1 : i64, tpu.core_type = #tpu.core_type<tc>, window_params = [{transform_indices = @transform_0, window_bounds = array<i64: 16, 32>}, {transform_indices = @transform_1, window_bounds = array<i64: 32, 32>}, {transform_indices = @transform_2, window_bounds = array<i64: 1, 32>}, {transform_indices = @transform_3, window_bounds = array<i64: 16, 32>}, {transform_indices = @transform_4, window_bounds = array<i64: 16, 32>}]} {
    %c0_i32 = arith.constant 0 : i32
    %0 = arith.cmpi eq, %arg2, %c0_i32 : i32
    %1 = arith.extui %0 : i1 to i32
    %c0_i32_0 = arith.constant 0 : i32
    %2 = arith.cmpi ne, %1, %c0_i32_0 : i32
    scf.if %2 {
      %cst_10 = arith.constant 0.000000e+00 : f32
      %12 = vector.broadcast %cst_10 : f32 to vector<16x32xf32>
      %c0_11 = arith.constant 0 : index
      %c0_12 = arith.constant 0 : index
      %13 = vector.load %arg8[%c0_11, %c0_12] : memref<16x32xf32, #tpu.memory_space<vmem>>, vector<16x32xf32>
      tpu.vector_store %arg8[%c0_11, %c0_12], %12 {strides = array<i32>} : memref<16x32xf32, #tpu.memory_space<vmem>>, vector<16x32xf32>,
    } else {
    }
    %c0 = arith.constant 0 : index
    %c0_1 = arith.constant 0 : index
    %3 = vector.load %arg8[%c0, %c0_1] : memref<16x32xf32, #tpu.memory_space<vmem>>, vector<16x32xf32>
    %c0_2 = arith.constant 0 : index
    %c0_3 = arith.constant 0 : index
    %4 = vector.load %arg3[%c0_2, %c0_3] : memref<16x32xbf16, #tpu.memory_space<vmem>>, vector<16x32xbf16>
    %c0_4 = arith.constant 0 : index
    %c0_5 = arith.constant 0 : index
    %5 = vector.load %arg4[%c0_4, %c0_5] : memref<32x32xbf16, #tpu.memory_space<vmem>>, vector<32x32xbf16>
    %cst = arith.constant dense<0.000000e+00> : vector<16x32xf32>
    %6 = tpu.matmul %4, %5, %cst {dimension_numbers = #tpu.dot_dimension_numbers<[1], [0], [0], [1], [0, 0, 1, 1], [], []>} : vector<16x32xbf16>, vector<32x32xbf16>, vector<16x32xf32> -> vector<16x32xf32>
    %7 = arith.addf %3, %6 : vector<16x32xf32>
    %c0_6 = arith.constant 0 : index
    %c0_7 = arith.constant 0 : index
    %8 = vector.load %arg8[%c0_6, %c0_7] : memref<16x32xf32, #tpu.memory_space<vmem>>, vector<16x32xf32>
    tpu.vector_store %arg8[%c0_6, %c0_7], %7 {strides = array<i32>} : memref<16x32xf32, #tpu.memory_space<vmem>>, vector<16x32xf32>,
    %c0_i32_8 = arith.constant 0 : i32
    %9 = arith.cmpi eq, %arg2, %c0_i32_8 : i32
    %10 = arith.extui %9 : i1 to i32
    %c0_i32_9 = arith.constant 0 : i32
    %11 = arith.cmpi ne, %10, %c0_i32_9 : i32
    scf.if %11 {
      %c0_10 = arith.constant 0 : index
      %c0_11 = arith.constant 0 : index
      %12 = vector.load %arg8[%c0_10, %c0_11] : memref<16x32xf32, #tpu.memory_space<vmem>>, vector<16x32xf32>
      %c0_12 = arith.constant 0 : index
      %c0_13 = arith.constant 0 : index
      %13 = vector.load %arg5[%c0_12, %c0_13] : memref<1x32xf32, #tpu.memory_space<vmem>>, vector<1x32xf32>
      %14 = vector.broadcast %13 : vector<1x32xf32> to vector<16x32xf32>
      %15 = arith.addf %12, %14 : vector<16x32xf32>
      %c0_14 = arith.constant 0 : index
      %c0_15 = arith.constant 0 : index
      %16 = vector.load %arg6[%c0_14, %c0_15] : memref<16x32xf32, #tpu.memory_space<vmem>>, vector<16x32xf32>
      %17 = arith.addf %15, %16 : vector<16x32xf32>
      %c0_16 = arith.constant 0 : index
      %c0_17 = arith.constant 0 : index
      %18 = vector.load %arg7[%c0_16, %c0_17] : memref<16x32xf32, #tpu.memory_space<vmem>>, vector<16x32xf32>
      tpu.vector_store %arg7[%c0_16, %c0_17], %17 {strides = array<i32>} : memref<16x32xf32, #tpu.memory_space<vmem>>, vector<16x32xf32>,
    } else {
    }
    return
  }
  func.func @transform_0(%arg0: i32, %arg1: i32, %arg2: i32) -> (i32, i32) {
    %c0_i32 = arith.constant 0 : i32
    return %arg0, %arg2 : i32, i32
  }
  func.func @transform_1(%arg0: i32, %arg1: i32, %arg2: i32) -> (i32, i32) {
    %c0_i32 = arith.constant 0 : i32
    return %arg2, %arg1 : i32, i32
  }
  func.func @transform_2(%arg0: i32, %arg1: i32, %arg2: i32) -> (i32, i32) {
    %c0_i32 = arith.constant 0 : i32
    %c0_i32_0 = arith.constant 0 : i32
    return %c0_i32, %arg1 : i32, i32
  }
  func.func @transform_3(%arg0: i32, %arg1: i32, %arg2: i32) -> (i32, i32) {
    %c0_i32 = arith.constant 0 : i32
    return %arg0, %arg1 : i32, i32
  }
  func.func @transform_4(%arg0: i32, %arg1: i32, %arg2: i32) -> (i32, i32) {
    %c0_i32 = arith.constant 0 : i32
    return %arg0, %arg1 : i32, i32
  }
}

module attributes {stable_mosaic.version = 11 : i64} {
  func.func @_ln_ffn_kernel(%arg0: i32, %arg1: i32, %arg2: memref<16x32xf32, #tpu.memory_space<vmem>>, %arg3: memref<1x32xf32, #tpu.memory_space<vmem>>, %arg4: memref<1x32xf32, #tpu.memory_space<vmem>>, %arg5: memref<32x128xbf16, #tpu.memory_space<vmem>>, %arg6: memref<1x128xf32, #tpu.memory_space<vmem>>, %arg7: memref<128x32xbf16, #tpu.memory_space<vmem>>, %arg8: memref<1x32xf32, #tpu.memory_space<vmem>>, %arg9: memref<16x32xf32, #tpu.memory_space<vmem>>, %arg10: memref<16x32xbf16, #tpu.memory_space<vmem>>, %arg11: memref<16x32xf32, #tpu.memory_space<vmem>>) attributes {dimension_semantics = [#tpu.dimension_semantics<parallel>, #tpu.dimension_semantics<arbitrary>], iteration_bounds = array<i64: 1, 1>, scalar_prefetch = 0 : i64, scratch_operands = 2 : i64, tpu.core_type = #tpu.core_type<tc>, window_params = [{transform_indices = @transform_0, window_bounds = array<i64: 16, 32>}, {pipeline_mode = #tpu.pipeline_mode<synchronous>, transform_indices = @transform_1, window_bounds = array<i64: 1, 32>}, {pipeline_mode = #tpu.pipeline_mode<synchronous>, transform_indices = @transform_2, window_bounds = array<i64: 1, 32>}, {transform_indices = @transform_3, window_bounds = array<i64: 32, 128>}, {transform_indices = @transform_4, window_bounds = array<i64: 1, 128>}, {transform_indices = @transform_5, window_bounds = array<i64: 128, 32>}, {pipeline_mode = #tpu.pipeline_mode<synchronous>, transform_indices = @transform_6, window_bounds = array<i64: 1, 32>}, {transform_indices = @transform_7, window_bounds = array<i64: 16, 32>}]} {
    %c0_i32 = arith.constant 0 : i32
    %0 = arith.cmpi eq, %arg1, %c0_i32 : i32
    %1 = arith.extui %0 : i1 to i32
    %c0_i32_0 = arith.constant 0 : i32
    %2 = arith.cmpi ne, %1, %c0_i32_0 : i32
    scf.if %2 {
      %c0_18 = arith.constant 0 : index
      %c0_19 = arith.constant 0 : index
      %26 = vector.load %arg2[%c0_18, %c0_19] : memref<16x32xf32, #tpu.memory_space<vmem>>, vector<16x32xf32>
      %c0_20 = arith.constant 0 : index
      %c0_21 = arith.constant 0 : index
      %27 = vector.load %arg3[%c0_20, %c0_21] : memref<1x32xf32, #tpu.memory_space<vmem>>, vector<1x32xf32>
      %c0_22 = arith.constant 0 : index
      %c0_23 = arith.constant 0 : index
      %28 = vector.load %arg4[%c0_22, %c0_23] : memref<1x32xf32, #tpu.memory_space<vmem>>, vector<1x32xf32>
      %cst_24 = arith.constant dense<0.000000e+00> : vector<16xf32>
      %29 = vector.multi_reduction <add>, %26, %cst_24 [1] : vector<16x32xf32> to vector<16xf32>
      %30 = vector.shape_cast %29 : vector<16xf32> to vector<16x1xf32>
      %cst_25 = arith.constant 3.200000e+01 : f32
      %31 = vector.broadcast %cst_25 : f32 to vector<16x1xf32>
      %32 = arith.divf %30, %31 : vector<16x1xf32>
      %33 = vector.broadcast %32 : vector<16x1xf32> to vector<16x32xf32>
      %34 = arith.subf %26, %33 : vector<16x32xf32>
      %35 = arith.mulf %34, %34 : vector<16x32xf32>
      %cst_26 = arith.constant dense<0.000000e+00> : vector<16xf32>
      %36 = vector.multi_reduction <add>, %35, %cst_26 [1] : vector<16x32xf32> to vector<16xf32>
      %37 = vector.shape_cast %36 : vector<16xf32> to vector<16x1xf32>
      %cst_27 = arith.constant 3.200000e+01 : f32
      %38 = vector.broadcast %cst_27 : f32 to vector<16x1xf32>
      %39 = arith.divf %37, %38 : vector<16x1xf32>
      %40 = vector.broadcast %32 : vector<16x1xf32> to vector<16x32xf32>
      %41 = arith.subf %26, %40 : vector<16x32xf32>
      %cst_28 = arith.constant 9.99999974E-6 : f32
      %42 = vector.broadcast %cst_28 : f32 to vector<16x1xf32>
      %43 = arith.addf %39, %42 : vector<16x1xf32>
      %44 = math.rsqrt %43 : vector<16x1xf32>
      %45 = vector.broadcast %44 : vector<16x1xf32> to vector<16x32xf32>
      %46 = arith.mulf %41, %45 : vector<16x32xf32>
      %47 = vector.broadcast %27 : vector<1x32xf32> to vector<16x32xf32>
      %48 = arith.mulf %46, %47 : vector<16x32xf32>
      %49 = vector.broadcast %28 : vector<1x32xf32> to vector<16x32xf32>
      %50 = arith.addf %48, %49 : vector<16x32xf32>
      %51 = arith.truncf %50 : vector<16x32xf32> to vector<16x32xbf16>
      %c0_29 = arith.constant 0 : index
      %c0_30 = arith.constant 0 : index
      %52 = vector.load %arg10[%c0_29, %c0_30] : memref<16x32xbf16, #tpu.memory_space<vmem>>, vector<16x32xbf16>
      tpu.vector_store %arg10[%c0_29, %c0_30], %51 {strides = array<i32>} : memref<16x32xbf16, #tpu.memory_space<vmem>>, vector<16x32xbf16>,
      %cst_31 = arith.constant 0.000000e+00 : f32
      %53 = vector.broadcast %cst_31 : f32 to vector<16x32xf32>
      %c0_32 = arith.constant 0 : index
      %c0_33 = arith.constant 0 : index
      %54 = vector.load %arg11[%c0_32, %c0_33] : memref<16x32xf32, #tpu.memory_space<vmem>>, vector<16x32xf32>
      tpu.vector_store %arg11[%c0_32, %c0_33], %53 {strides = array<i32>} : memref<16x32xf32, #tpu.memory_space<vmem>>, vector<16x32xf32>,
    } else {
    }
    %c0 = arith.constant 0 : index
    %c0_1 = arith.constant 0 : index
    %3 = vector.load %arg10[%c0, %c0_1] : memref<16x32xbf16, #tpu.memory_space<vmem>>, vector<16x32xbf16>
    %c0_2 = arith.constant 0 : index
    %c0_3 = arith.constant 0 : index
    %4 = vector.load %arg5[%c0_2, %c0_3] : memref<32x128xbf16, #tpu.memory_space<vmem>>, vector<32x128xbf16>
    %cst = arith.constant dense<0.000000e+00> : vector<16x128xf32>
    %5 = tpu.matmul %3, %4, %cst {dimension_numbers = #tpu.dot_dimension_numbers<[1], [0], [0], [1], [0, 0, 1, 1], [], []>} : vector<16x32xbf16>, vector<32x128xbf16>, vector<16x128xf32> -> vector<16x128xf32>
    %c0_4 = arith.constant 0 : index
    %c0_5 = arith.constant 0 : index
    %6 = vector.load %arg6[%c0_4, %c0_5] : memref<1x128xf32, #tpu.memory_space<vmem>>, vector<1x128xf32>
    %7 = vector.broadcast %6 : vector<1x128xf32> to vector<16x128xf32>
    %8 = arith.addf %5, %7 : vector<16x128xf32>
    %cst_6 = arith.constant 5.000000e-01 : f32
    %9 = vector.broadcast %cst_6 : f32 to vector<16x128xf32>
    %10 = arith.mulf %9, %8 : vector<16x128xf32>
    %cst_7 = arith.constant 0.707106769 : f32
    %11 = vector.broadcast %cst_7 : f32 to vector<16x128xf32>
    %12 = arith.mulf %8, %11 : vector<16x128xf32>
    %13 = math.erf %12 : vector<16x128xf32>
    %cst_8 = arith.constant 1.000000e+00 : f32
    %14 = vector.broadcast %cst_8 : f32 to vector<16x128xf32>
    %15 = arith.addf %14, %13 : vector<16x128xf32>
    %16 = arith.mulf %10, %15 : vector<16x128xf32>
    %c0_9 = arith.constant 0 : index
    %c0_10 = arith.constant 0 : index
    %17 = vector.load %arg11[%c0_9, %c0_10] : memref<16x32xf32, #tpu.memory_space<vmem>>, vector<16x32xf32>
    %18 = arith.truncf %16 : vector<16x128xf32> to vector<16x128xbf16>
    %c0_11 = arith.constant 0 : index
    %c0_12 = arith.constant 0 : index
    %19 = vector.load %arg7[%c0_11, %c0_12] : memref<128x32xbf16, #tpu.memory_space<vmem>>, vector<128x32xbf16>
    %cst_13 = arith.constant dense<0.000000e+00> : vector<16x32xf32>
    %20 = tpu.matmul %18, %19, %cst_13 {dimension_numbers = #tpu.dot_dimension_numbers<[1], [0], [0], [1], [0, 0, 1, 1], [], []>} : vector<16x128xbf16>, vector<128x32xbf16>, vector<16x32xf32> -> vector<16x32xf32>
    %21 = arith.addf %17, %20 : vector<16x32xf32>
    %c0_14 = arith.constant 0 : index
    %c0_15 = arith.constant 0 : index
    %22 = vector.load %arg11[%c0_14, %c0_15] : memref<16x32xf32, #tpu.memory_space<vmem>>, vector<16x32xf32>
    tpu.vector_store %arg11[%c0_14, %c0_15], %21 {strides = array<i32>} : memref<16x32xf32, #tpu.memory_space<vmem>>, vector<16x32xf32>,
    %c0_i32_16 = arith.constant 0 : i32
    %23 = arith.cmpi eq, %arg1, %c0_i32_16 : i32
    %24 = arith.extui %23 : i1 to i32
    %c0_i32_17 = arith.constant 0 : i32
    %25 = arith.cmpi ne, %24, %c0_i32_17 : i32
    scf.if %25 {
      %c0_18 = arith.constant 0 : index
      %c0_19 = arith.constant 0 : index
      %26 = vector.load %arg11[%c0_18, %c0_19] : memref<16x32xf32, #tpu.memory_space<vmem>>, vector<16x32xf32>
      %c0_20 = arith.constant 0 : index
      %c0_21 = arith.constant 0 : index
      %27 = vector.load %arg8[%c0_20, %c0_21] : memref<1x32xf32, #tpu.memory_space<vmem>>, vector<1x32xf32>
      %28 = vector.broadcast %27 : vector<1x32xf32> to vector<16x32xf32>
      %29 = arith.addf %26, %28 : vector<16x32xf32>
      %c0_22 = arith.constant 0 : index
      %c0_23 = arith.constant 0 : index
      %30 = vector.load %arg2[%c0_22, %c0_23] : memref<16x32xf32, #tpu.memory_space<vmem>>, vector<16x32xf32>
      %31 = arith.addf %29, %30 : vector<16x32xf32>
      %c0_24 = arith.constant 0 : index
      %c0_25 = arith.constant 0 : index
      %32 = vector.load %arg9[%c0_24, %c0_25] : memref<16x32xf32, #tpu.memory_space<vmem>>, vector<16x32xf32>
      tpu.vector_store %arg9[%c0_24, %c0_25], %31 {strides = array<i32>} : memref<16x32xf32, #tpu.memory_space<vmem>>, vector<16x32xf32>,
    } else {
    }
    return
  }
  func.func @transform_0(%arg0: i32, %arg1: i32) -> (i32, i32) {
    %c0_i32 = arith.constant 0 : i32
    %c0_i32_0 = arith.constant 0 : i32
    return %arg0, %c0_i32 : i32, i32
  }
  func.func @transform_1(%arg0: i32, %arg1: i32) -> (i32, i32) {
    %c0_i32 = arith.constant 0 : i32
    %c0_i32_0 = arith.constant 0 : i32
    %c0_i32_1 = arith.constant 0 : i32
    return %c0_i32, %c0_i32_0 : i32, i32
  }
  func.func @transform_2(%arg0: i32, %arg1: i32) -> (i32, i32) {
    %c0_i32 = arith.constant 0 : i32
    %c0_i32_0 = arith.constant 0 : i32
    %c0_i32_1 = arith.constant 0 : i32
    return %c0_i32, %c0_i32_0 : i32, i32
  }
  func.func @transform_3(%arg0: i32, %arg1: i32) -> (i32, i32) {
    %c0_i32 = arith.constant 0 : i32
    %c0_i32_0 = arith.constant 0 : i32
    return %c0_i32, %arg1 : i32, i32
  }
  func.func @transform_4(%arg0: i32, %arg1: i32) -> (i32, i32) {
    %c0_i32 = arith.constant 0 : i32
    %c0_i32_0 = arith.constant 0 : i32
    return %c0_i32, %arg1 : i32, i32
  }
  func.func @transform_5(%arg0: i32, %arg1: i32) -> (i32, i32) {
    %c0_i32 = arith.constant 0 : i32
    %c0_i32_0 = arith.constant 0 : i32
    return %arg1, %c0_i32 : i32, i32
  }
  func.func @transform_6(%arg0: i32, %arg1: i32) -> (i32, i32) {
    %c0_i32 = arith.constant 0 : i32
    %c0_i32_0 = arith.constant 0 : i32
    %c0_i32_1 = arith.constant 0 : i32
    return %c0_i32, %c0_i32_0 : i32, i32
  }
  func.func @transform_7(%arg0: i32, %arg1: i32) -> (i32, i32) {
    %c0_i32 = arith.constant 0 : i32
    %c0_i32_0 = arith.constant 0 : i32
    return %arg0, %c0_i32 : i32, i32
  }
}

module attributes {stable_mosaic.version = 11 : i64} {
  func.func @_ln_head_pair_kernel(%arg0: i32, %arg1: memref<16x32xf32, #tpu.memory_space<vmem>>, %arg2: memref<1x32xf32, #tpu.memory_space<vmem>>, %arg3: memref<1x32xf32, #tpu.memory_space<vmem>>, %arg4: memref<32x8xbf16, #tpu.memory_space<vmem>>, %arg5: memref<1x8xf32, #tpu.memory_space<vmem>>, %arg6: memref<16x8xf32, #tpu.memory_space<vmem>>) attributes {dimension_semantics = [#tpu.dimension_semantics<parallel>], iteration_bounds = array<i64: 1>, scalar_prefetch = 0 : i64, scratch_operands = 0 : i64, tpu.core_type = #tpu.core_type<tc>, window_params = [{transform_indices = @transform_0, window_bounds = array<i64: 16, 32>}, {pipeline_mode = #tpu.pipeline_mode<synchronous>, transform_indices = @transform_1, window_bounds = array<i64: 1, 32>}, {pipeline_mode = #tpu.pipeline_mode<synchronous>, transform_indices = @transform_2, window_bounds = array<i64: 1, 32>}, {pipeline_mode = #tpu.pipeline_mode<synchronous>, transform_indices = @transform_3, window_bounds = array<i64: 32, 8>}, {pipeline_mode = #tpu.pipeline_mode<synchronous>, transform_indices = @transform_4, window_bounds = array<i64: 1, 8>}, {transform_indices = @transform_5, window_bounds = array<i64: 16, 8>}]} {
    %c0 = arith.constant 0 : index
    %c0_0 = arith.constant 0 : index
    %0 = vector.load %arg1[%c0, %c0_0] : memref<16x32xf32, #tpu.memory_space<vmem>>, vector<16x32xf32>
    %c0_1 = arith.constant 0 : index
    %c0_2 = arith.constant 0 : index
    %1 = vector.load %arg2[%c0_1, %c0_2] : memref<1x32xf32, #tpu.memory_space<vmem>>, vector<1x32xf32>
    %c0_3 = arith.constant 0 : index
    %c0_4 = arith.constant 0 : index
    %2 = vector.load %arg3[%c0_3, %c0_4] : memref<1x32xf32, #tpu.memory_space<vmem>>, vector<1x32xf32>
    %cst = arith.constant dense<0.000000e+00> : vector<16xf32>
    %3 = vector.multi_reduction <add>, %0, %cst [1] : vector<16x32xf32> to vector<16xf32>
    %4 = vector.shape_cast %3 : vector<16xf32> to vector<16x1xf32>
    %cst_5 = arith.constant 3.200000e+01 : f32
    %5 = vector.broadcast %cst_5 : f32 to vector<16x1xf32>
    %6 = arith.divf %4, %5 : vector<16x1xf32>
    %7 = vector.broadcast %6 : vector<16x1xf32> to vector<16x32xf32>
    %8 = arith.subf %0, %7 : vector<16x32xf32>
    %9 = arith.mulf %8, %8 : vector<16x32xf32>
    %cst_6 = arith.constant dense<0.000000e+00> : vector<16xf32>
    %10 = vector.multi_reduction <add>, %9, %cst_6 [1] : vector<16x32xf32> to vector<16xf32>
    %11 = vector.shape_cast %10 : vector<16xf32> to vector<16x1xf32>
    %cst_7 = arith.constant 3.200000e+01 : f32
    %12 = vector.broadcast %cst_7 : f32 to vector<16x1xf32>
    %13 = arith.divf %11, %12 : vector<16x1xf32>
    %14 = vector.broadcast %6 : vector<16x1xf32> to vector<16x32xf32>
    %15 = arith.subf %0, %14 : vector<16x32xf32>
    %cst_8 = arith.constant 9.99999974E-6 : f32
    %16 = vector.broadcast %cst_8 : f32 to vector<16x1xf32>
    %17 = arith.addf %13, %16 : vector<16x1xf32>
    %18 = math.rsqrt %17 : vector<16x1xf32>
    %19 = vector.broadcast %18 : vector<16x1xf32> to vector<16x32xf32>
    %20 = arith.mulf %15, %19 : vector<16x32xf32>
    %21 = vector.broadcast %1 : vector<1x32xf32> to vector<16x32xf32>
    %22 = arith.mulf %20, %21 : vector<16x32xf32>
    %23 = vector.broadcast %2 : vector<1x32xf32> to vector<16x32xf32>
    %24 = arith.addf %22, %23 : vector<16x32xf32>
    %25 = arith.truncf %24 : vector<16x32xf32> to vector<16x32xbf16>
    %c0_9 = arith.constant 0 : index
    %c0_10 = arith.constant 0 : index
    %26 = vector.load %arg4[%c0_9, %c0_10] : memref<32x8xbf16, #tpu.memory_space<vmem>>, vector<32x8xbf16>
    %cst_11 = arith.constant dense<0.000000e+00> : vector<16x8xf32>
    %27 = tpu.matmul %25, %26, %cst_11 {dimension_numbers = #tpu.dot_dimension_numbers<[1], [0], [0], [1], [0, 0, 1, 1], [], []>} : vector<16x32xbf16>, vector<32x8xbf16>, vector<16x8xf32> -> vector<16x8xf32>
    %c0_12 = arith.constant 0 : index
    %c0_13 = arith.constant 0 : index
    %28 = vector.load %arg5[%c0_12, %c0_13] : memref<1x8xf32, #tpu.memory_space<vmem>>, vector<1x8xf32>
    %29 = vector.broadcast %28 : vector<1x8xf32> to vector<16x8xf32>
    %30 = arith.addf %27, %29 : vector<16x8xf32>
    %31 = vector.extract_strided_slice %30 {offsets = [0, 0], sizes = [16, 4], strides = [1, 1]} : vector<16x8xf32> to vector<16x4xf32>
    %32 = vector.extract_strided_slice %30 {offsets = [0, 4], sizes = [16, 4], strides = [1, 1]} : vector<16x8xf32> to vector<16x4xf32>
    %33 = arith.subf %31, %32 : vector<16x4xf32>
    %34 = math.absf %33 : vector<16x4xf32>
    %cst_14 = arith.constant 0.000000e+00 : f32
    %35 = vector.broadcast %cst_14 : f32 to vector<16x4xf32>
    %36 = arith.subf %35, %34 : vector<16x4xf32>
    %37 = math.exp %36 : vector<16x4xf32>
    %cst_15 = arith.constant 0.000000e+00 : f32
    %38 = vector.broadcast %cst_15 : f32 to vector<16x4xf32>
    %39 = arith.cmpf oge, %33, %38 : vector<16x4xf32>
    %cst_16 = arith.constant 1.000000e+00 : f32
    %40 = vector.broadcast %cst_16 : f32 to vector<16x4xf32>
    %41 = arith.addf %40, %37 : vector<16x4xf32>
    %cst_17 = arith.constant 1.000000e+00 : f32
    %42 = vector.broadcast %cst_17 : f32 to vector<16x4xf32>
    %43 = arith.divf %42, %41 : vector<16x4xf32>
    %cst_18 = arith.constant 1.000000e+00 : f32
    %44 = vector.broadcast %cst_18 : f32 to vector<16x4xf32>
    %45 = arith.addf %44, %37 : vector<16x4xf32>
    %46 = arith.divf %37, %45 : vector<16x4xf32>
    %47 = arith.select %39, %43, %46 : vector<16x4xi1>, vector<16x4xf32>
    %cst_19 = arith.constant 1.000000e+00 : f32
    %48 = vector.broadcast %cst_19 : f32 to vector<16x4xf32>
    %49 = arith.subf %48, %47 : vector<16x4xf32>
    %50 = tpu.concatenate %47, %49 in 1 : vector<16x4xf32>, vector<16x4xf32> -> vector<16x8xf32>
    %c0_20 = arith.constant 0 : index
    %c0_21 = arith.constant 0 : index
    %51 = vector.load %arg6[%c0_20, %c0_21] : memref<16x8xf32, #tpu.memory_space<vmem>>, vector<16x8xf32>
    tpu.vector_store %arg6[%c0_20, %c0_21], %50 {strides = array<i32>} : memref<16x8xf32, #tpu.memory_space<vmem>>, vector<16x8xf32>,
    return
  }
  func.func @transform_0(%arg0: i32) -> (i32, i32) {
    %c0_i32 = arith.constant 0 : i32
    %c0_i32_0 = arith.constant 0 : i32
    return %arg0, %c0_i32 : i32, i32
  }
  func.func @transform_1(%arg0: i32) -> (i32, i32) {
    %c0_i32 = arith.constant 0 : i32
    %c0_i32_0 = arith.constant 0 : i32
    %c0_i32_1 = arith.constant 0 : i32
    return %c0_i32, %c0_i32_0 : i32, i32
  }
  func.func @transform_2(%arg0: i32) -> (i32, i32) {
    %c0_i32 = arith.constant 0 : i32
    %c0_i32_0 = arith.constant 0 : i32
    %c0_i32_1 = arith.constant 0 : i32
    return %c0_i32, %c0_i32_0 : i32, i32
  }
  func.func @transform_3(%arg0: i32) -> (i32, i32) {
    %c0_i32 = arith.constant 0 : i32
    %c0_i32_0 = arith.constant 0 : i32
    %c0_i32_1 = arith.constant 0 : i32
    return %c0_i32, %c0_i32_0 : i32, i32
  }
  func.func @transform_4(%arg0: i32) -> (i32, i32) {
    %c0_i32 = arith.constant 0 : i32
    %c0_i32_0 = arith.constant 0 : i32
    %c0_i32_1 = arith.constant 0 : i32
    return %c0_i32, %c0_i32_0 : i32, i32
  }
  func.func @transform_5(%arg0: i32) -> (i32, i32) {
    %c0_i32 = arith.constant 0 : i32
    %c0_i32_0 = arith.constant 0 : i32
    return %arg0, %c0_i32 : i32, i32
  }
}

</mosaic_0001>

<llo_original>
// kernel: bert_forward.10
$region0: #{bert_forward.10}
  #allocation0 [shape = 'u32[]', space=smem, size = 0x4, offset = 0x4, fixed_abs, tag = 'smem constant byte address 0x4 - core index']
  #allocation1 [shape = 'u32[144,128]{1,0:T(1,128)}', space=vmem, size = 0x12000, scoped, tag = 'internal scratch']
  #allocation2 [shape = 'f32[16,32]{1,0:T(8,128)}', space=vmem, size = 0x2000, scoped, tag = 'scratch operand']
  %s0 = inlined_call_operand.vmem [shape: f32[16,4], index: 0, kind: input, shape index: {}]
  %s1 = inlined_call_operand.vmem [shape: bf16[4,32], index: 1, kind: input, shape index: {}]
  %s2 = inlined_call_operand.vmem [shape: f32[1,32], index: 2, kind: input, shape index: {}]
  %s3 = inlined_call_operand.vmem [shape: f32[16,32], index: 3, kind: output, shape index: {}]
  %s4 = sld [smem:[#allocation0]]
  $region30: #{bert_forward.10} parent=0
    _
  %s6 = ssub.s32 1, %s4
  %s7 = scalar_select 0, %s6, %s4
  // Predicated region
  $region2: #{bert_forward.10} parent=0 // pred_check
    _
  $region3: #{bert_forward.10} parent=0 // pred_check_branch
    %9 = sbr.rel (0) target = $region5
  $region4: #{bert_forward.10} parent=0 // pred_region
    _
  $region5: #{bert_forward.10} parent=0 // pred_fallthru
    _
  // Predicated region
  $region6: #{bert_forward.10} parent=0 // pred_check
    _
  $region7: #{bert_forward.10} parent=0 // pred_check_branch
    %11 = sbr.rel (0) target = $region9
  $region8: #{bert_forward.10} parent=0 // pred_region
    _
  $region9: #{bert_forward.10} parent=0 // pred_fallthru
    _
  // Predicated region
  $region10: #{bert_forward.10} parent=0 // pred_check
    _
  $region11: #{bert_forward.10} parent=0 // pred_check_branch
    %13 = sbr.rel (0) target = $region13
  $region12: #{bert_forward.10} parent=0 // pred_region
    _
  $region13: #{bert_forward.10} parent=0 // pred_fallthru
    _
  %p15 = scmp.eq.s32.totalorder 0, 0
  // Predicated region
  $region14: #{bert_forward.10} parent=0 // pred_check
    %p16 = pneg %p15
  $region15: #{bert_forward.10} parent=0 // pred_check_branch
    %18 = sbr.rel (%p16) target = $region17
  $region16: #{bert_forward.10} parent=0 // pred_region
    %vm19 = vcmask 261120
    %20 = vst.msk [vmem:[#allocation2] sm:$0xff] %vm19, 0.0
    %21 = vst.msk [vmem:[#allocation2 + $0x8] sm:$0xff] %vm19, 0.0
  $region17: #{bert_forward.10} parent=0 // pred_fallthru
    _
  %v22 = vld [vmem:[#allocation2] sm:$0xff]
  %v23 = vld [vmem:[#allocation2 + $0x8] sm:$0xff]
  %v24 = vld [vmem:[%s0] sm:$0xff]
  %v25 = vld [vmem:[%s0 + $0x8] sm:$0xff]
  %v26 = vpack.c.bf16 %v25, %v24
  %v27 = vld [vmem:[%s1] sm:$0x3]
  %vm28 = vcmask 31744
  %v30 = vsel %vm28, %v26, 0
  %vm32 = vcmask 1041408
  %v34 = vsel %vm32, %v27, 0
  %36 = vmatprep.subr.bf16.mxu0 0
  %37 = vmatpush1.bf16.msra.mxu0 %v34
  %38 = vmatprep.subr.bf16.mxu0 0
  %39 = vmatpush1.bf16.msra.mxu0 0
  %40 = vmatprep.subr.bf16.mxu0 0
  %41 = vmatpush1.bf16.msra.mxu0 0
  %42 = vmatprep.subr.bf16.mxu0 0
  %43 = vmatpush1.bf16.msra.mxu0 0
  %44 = vmatprep.subr.bf16.mxu0 0
  %45 = vmatpush1.bf16.msra.mxu0 0
  %46 = vmatprep.subr.bf16.mxu0 0
  %47 = vmatpush1.bf16.msra.mxu0 0
  %48 = vmatprep.subr.bf16.mxu0 0
  %49 = vmatpush1.bf16.msra.mxu0 0
  %50 = vmatprep.subr.bf16.mxu0 0
  %51 = vmatpush1.bf16.msra.mxu0 0
  %52 = vmatprep.subr.bf16.mxu0 0
  %53 = vmatpush1.bf16.msra.mxu0 0
  %54 = vmatprep.subr.bf16.mxu0 0
  %55 = vmatpush1.bf16.msra.mxu0 0
  %56 = vmatprep.subr.bf16.mxu0 0
  %57 = vmatpush1.bf16.msra.mxu0 0
  %58 = vmatprep.subr.bf16.mxu0 0
  %59 = vmatpush1.bf16.msra.mxu0 0
  %60 = vmatprep.subr.bf16.mxu0 0
  %61 = vmatpush1.bf16.msra.mxu0 0
  %62 = vmatprep.subr.bf16.mxu0 0
  %63 = vmatpush1.bf16.msra.mxu0 0
  %64 = vmatprep.subr.bf16.mxu0 0
  %65 = vmatpush1.bf16.msra.mxu0 0
  %66 = vmatprep.subr.bf16.mxu0 0
  %67 = vmatpush1.bf16.msra.mxu0 0
  %68 = vmatprep.mubr.bf16.mxu0 0
  %69 = vmatmul.mubr.bf16.gmra.mrb[0].mxu0 %v30
  %v70 = vpop.f32.mrb[0].mxu0
  %v71 = vadd.f32 0.0, %v70
  %v72 = vpop.f32.mrb[0].mxu0
  %v73 = vpop.f32.mrb[0].mxu0
  %v74 = vadd.f32 0.0, %v73
  %v75 = vpop.f32.mrb[0].mxu0
  %76 = vdwg.mxu0
  %v77 = vadd.f32 %v22, %v71
  %v78 = vadd.f32 %v23, %v74
  %vm79 = vcmask 261120
  %80 = vst.msk [vmem:[#allocation2] sm:$0xff] %vm79, %v77
  %81 = vst.msk [vmem:[#allocation2 + $0x8] sm:$0xff] %vm79, %v78
  // Predicated region
  $region18: #{bert_forward.10} parent=0 // pred_check
    %p82 = pneg %p15
  $region19: #{bert_forward.10} parent=0 // pred_check_branch
    %84 = sbr.rel (%p82) target = $region21
  $region20: #{bert_forward.10} parent=0 // pred_region
    %v85 = vld [vmem:[#allocation2] sm:$0xff]
    %v86 = vld [vmem:[#allocation2 + $0x8] sm:$0xff]
    %v87 = vld [vmem:[%s2] sm:$0x1]
    %v89 = vlaneseq
    %v90 = vshrl.u32 %v89, 7
    %v91 = vsub.s32 0, %v90
    %v92 = vrot.slane %v87, %v91
    %v94 = vadd.f32 %v85, %v92
    %v95 = vadd.f32 %v86, %v92
    %v96 = vmax.f32 %v94, 0.0
    %v97 = vmax.f32 %v95, 0.0
    %98 = vst.msk [vmem:[%s3] sm:$0xff] %vm79, %v96
    %99 = vst.msk [vmem:[%s3 + $0x8] sm:$0xff] %vm79, %v97
  $region21: #{bert_forward.10} parent=0 // pred_fallthru
    _
  // Predicated region
  $region22: #{bert_forward.10} parent=0 // pred_check
    _
  $region23: #{bert_forward.10} parent=0 // pred_check_branch
    %101 = sbr.rel (0) target = $region25
  $region24: #{bert_forward.10} parent=0 // pred_region
    _
  $region25: #{bert_forward.10} parent=0 // pred_fallthru
    _
  // Predicated region
  $region26: #{bert_forward.10} parent=0 // pred_check
    _
  $region27: #{bert_forward.10} parent=0 // pred_check_branch
    %103 = sbr.rel (0) target = $region29
  $region28: #{bert_forward.10} parent=0 // pred_region
    _
  $region29: #{bert_forward.10} parent=0 // pred_fallthru
    _

// kernel: bert_forward.11
$region0: #{bert_forward.11}
  #allocation0 [shape = 'u32[]', space=smem, size = 0x4, offset = 0x4, fixed_abs, tag = 'smem constant byte address 0x4 - core index']
  #allocation1 [shape = 'u32[144,128]{1,0:T(1,128)}', space=vmem, size = 0x12000, scoped, tag = 'internal scratch']
  #allocation2 [shape = 'bf16[16,32]{1,0:T(16,128)(2,1)}', space=vmem, size = 0x1000, scoped, tag = 'scratch operand']
  %s0 = inlined_call_operand.vmem [shape: f32[16,32], index: 0, kind: input, shape index: {}]
  %s1 = inlined_call_operand.vmem [shape: f32[1,32], index: 1, kind: input, shape index: {}]
  %s2 = inlined_call_operand.vmem [shape: f32[1,32], index: 2, kind: input, shape index: {}]
  %s3 = inlined_call_operand.vmem [shape: bf16[32,96], index: 3, kind: input, shape index: {}]
  %s4 = inlined_call_operand.vmem [shape: bf16[16,96], index: 4, kind: output, shape index: {}]
  %s5 = sld [smem:[#allocation0]]
  $region30: #{bert_forward.11} parent=0
    _
  %s7 = ssub.s32 1, %s5
  %s8 = scalar_select 0, %s7, %s5
  // Predicated region
  $region2: #{bert_forward.11} parent=0 // pred_check
    _
  $region3: #{bert_forward.11} parent=0 // pred_check_branch
    %10 = sbr.rel (0) target = $region5
  $region4: #{bert_forward.11} parent=0 // pred_region
    _
  $region5: #{bert_forward.11} parent=0 // pred_fallthru
    _
  // Predicated region
  $region6: #{bert_forward.11} parent=0 // pred_check
    _
  $region7: #{bert_forward.11} parent=0 // pred_check_branch
    %12 = sbr.rel (0) target = $region9
  $region8: #{bert_forward.11} parent=0 // pred_region
    _
  $region9: #{bert_forward.11} parent=0 // pred_fallthru
    _
  // Predicated region
  $region10: #{bert_forward.11} parent=0 // pred_check
    _
  $region11: #{bert_forward.11} parent=0 // pred_check_branch
    %14 = sbr.rel (0) target = $region13
  $region12: #{bert_forward.11} parent=0 // pred_region
    _
  $region13: #{bert_forward.11} parent=0 // pred_fallthru
    _
  // Predicated region
  $region14: #{bert_forward.11} parent=0 // pred_check
    _
  $region15: #{bert_forward.11} parent=0 // pred_check_branch
    %16 = sbr.rel (0) target = $region17
  $region16: #{bert_forward.11} parent=0 // pred_region
    _
  $region17: #{bert_forward.11} parent=0 // pred_fallthru
    _
  %p18 = scmp.eq.s32.totalorder 0, 0
  // Predicated region
  $region18: #{bert_forward.11} parent=0 // pred_check
    %p19 = pneg %p18
  $region19: #{bert_forward.11} parent=0 // pred_check_branch
    %21 = sbr.rel (%p19) target = $region21
  $region20: #{bert_forward.11} parent=0 // pred_region
    %v22 = vld [vmem:[%s0] sm:$0xff]
    %v23 = vld [vmem:[%s0 + $0x8] sm:$0xff]
    %v24 = vld [vmem:[%s1] sm:$0x1]
    %v25 = vld [vmem:[%s2] sm:$0x1]
    %vm26 = vcmask 261120
    %v27 = vsel %vm26, %v22, 0.0
    %28 = vadd.xlane.f32.xlu0 %v27
    %v29 = vpop.xlane.xlu0 %28
    %v30 = vsel %vm26, %v23, 0.0
    %31 = vadd.xlane.f32.xlu0 %v30
    %v32 = vpop.xlane.xlu0 %31
    %v33 = vrcp.pop 32.0
    %v34 = vmul.f32 %v29, %v33
    %v35 = vmul.f32 %v32, %v33
    %v36 = vsub.f32 %v22, %v34
    %v37 = vsub.f32 %v23, %v35
    %v38 = vmul.f32 %v36, %v36
    %v39 = vmul.f32 %v37, %v37
    %v40 = vsel %vm26, %v38, 0.0
    %41 = vadd.xlane.f32.xlu0 %v40
    %v42 = vpop.xlane.xlu0 %41
    %v43 = vsel %vm26, %v39, 0.0
    %44 = vadd.xlane.f32.xlu0 %v43
    %v45 = vpop.xlane.xlu0 %44
    %v46 = vmul.f32 %v42, %v33
    %v47 = vmul.f32 %v45, %v33
    %v48 = vadd.f32 %v46, 1e-05
    %v49 = vadd.f32 %v47, 1e-05
    %v50 = vrsqrt.pop %v48
    %v51 = vrsqrt.pop %v49
    %v52 = vmul.f32 %v36, %v50
    %v53 = vmul.f32 %v37, %v51
    %v55 = vlaneseq
    %v56 = vshrl.u32 %v55, 7
    %v57 = vsub.s32 0, %v56
    %v58 = vrot.slane %v24, %v57
    %v60 = vmul.f32 %v52, %v58
    %v61 = vmul.f32 %v53, %v58
    %v63 = vlaneseq
    %v64 = vshrl.u32 %v63, 7
    %v65 = vsub.s32 0, %v64
    %v66 = vrot.slane %v25, %v65
    %v68 = vadd.f32 %v60, %v66
    %v69 = vadd.f32 %v61, %v66
    %v70 = vpack.c.bf16 %v69, %v68
    %71 = vst.msk [vmem:[#allocation2] sm:$0xff] %vm26, %v70
  $region21: #{bert_forward.11} parent=0 // pred_fallthru
    _
  %v72 = vld [vmem:[#allocation2] sm:$0xff]
  %v73 = vld [vmem:[%s3] sm:$0xf]
  %v74 = vld [vmem:[%s3 + $0x4] sm:$0xf]
  %v75 = vld [vmem:[%s3 + $0x8] sm:$0xf]
  %v76 = vld [vmem:[%s3 + $0xc] sm:$0xf]
  %v81 = vunpack.c.l.b16 %v73
  %v82 = vunpack.c.l.b16 %v74
  %v83 = vunpack.c.l.b16 %v75
  %v84 = vunpack.c.l.b16 %v76
  %v85 = vpack.c.b16 %v82, %v81
  %v86 = vpack.c.b16 %v84, %v83
  %vm89 = vcmask 261120
  %v91 = vsel %vm89, %v72, 0
  %93 = vmatprep.subr.bf16.mxu0 0
  %94 = vmatpush1.bf16.msra.mxu0 %v85
  %95 = vmatprep.subr.bf16.mxu0 0
  %96 = vmatpush1.bf16.msra.mxu0 %v86
  %97 = vmatprep.subr.bf16.mxu0 0
  %98 = vmatpush1.bf16.msra.mxu0 0
  %99 = vmatprep.subr.bf16.mxu0 0
  %100 = vmatpush1.bf16.msra.mxu0 0
  %101 = vmatprep.subr.bf16.mxu0 0
  %102 = vmatpush1.bf16.msra.mxu0 0
  %103 = vmatprep.subr.bf16.mxu0 0
  %104 = vmatpush1.bf16.msra.mxu0 0
  %105 = vmatprep.subr.bf16.mxu0 0
  %106 = vmatpush1.bf16.msra.mxu0 0
  %107 = vmatprep.subr.bf16.mxu0 0
  %108 = vmatpush1.bf16.msra.mxu0 0
  %109 = vmatprep.subr.bf16.mxu0 0
  %110 = vmatpush1.bf16.msra.mxu0 0
  %111 = vmatprep.subr.bf16.mxu0 0
  %112 = vmatpush1.bf16.msra.mxu0 0
  %113 = vmatprep.subr.bf16.mxu0 0
  %114 = vmatpush1.bf16.msra.mxu0 0
  %115 = vmatprep.subr.bf16.mxu0 0
  %116 = vmatpush1.bf16.msra.mxu0 0
  %117 = vmatprep.subr.bf16.mxu0 0
  %118 = vmatpush1.bf16.msra.mxu0 0
  %119 = vmatprep.subr.bf16.mxu0 0
  %120 = vmatpush1.bf16.msra.mxu0 0
  %121 = vmatprep.subr.bf16.mxu0 0
  %122 = vmatpush1.bf16.msra.mxu0 0
  %123 = vmatprep.subr.bf16.mxu0 0
  %124 = vmatpush1.bf16.msra.mxu0 0
  %125 = vmatprep.mubr.bf16.mxu0 0
  %126 = vmatmul.mubr.bf16.gmra.mrb[0].mxu0 %v91
  %v127 = vpop.f32.mrb[0].mxu0
  %v128 = vadd.f32 0.0, %v127
  %v129 = vpop.f32.mrb[0].mxu0
  %v130 = vpop.f32.mrb[0].mxu0
  %v131 = vadd.f32 0.0, %v130
  %v132 = vpop.f32.mrb[0].mxu0
  %133 = vdwg.mxu0
  %v134 = vpack.c.bf16 %v131, %v128
  %v136 = vunpack.c.l.b16 %v134
  %v137 = vunpack.c.h.b16 %v134
  %v138 = vpack.c.b16 %v136, %v136
  %v139 = vpack.c.b16 %v137, %v137
  %vm142 = vcmask 781312
  %143 = vst.msk [vmem:[%s4] sm:$0xf] %vm142, %v138
  %144 = vst.msk [vmem:[%s4 + $0x4] sm:$0xf] %vm142, %v139
  // Predicated region
  $region22: #{bert_forward.11} parent=0 // pred_check
    _
  $region23: #{bert_forward.11} parent=0 // pred_check_branch
    %146 = sbr.rel (0) target = $region25
  $region24: #{bert_forward.11} parent=0 // pred_region
    _
  $region25: #{bert_forward.11} parent=0 // pred_fallthru
    _
  // Predicated region
  $region26: #{bert_forward.11} parent=0 // pred_check
    _
  $region27: #{bert_forward.11} parent=0 // pred_check_branch
    %148 = sbr.rel (0) target = $region29
  $region28: #{bert_forward.11} parent=0 // pred_region
    _
  $region29: #{bert_forward.11} parent=0 // pred_fallthru
    _

// kernel: bert_forward.13
$region0: #{bert_forward.13}
  #allocation0 [shape = 'u32[]', space=smem, size = 0x4, offset = 0x4, fixed_abs, tag = 'smem constant byte address 0x4 - core index']
  #allocation1 [shape = 'u32[144,128]{1,0:T(1,128)}', space=vmem, size = 0x12000, scoped, tag = 'internal scratch']
  #allocation2 [shape = 'f32[16,32]{1,0:T(8,128)}', space=vmem, size = 0x2000, scoped, tag = 'scratch operand']
  %s0 = inlined_call_operand.vmem [shape: bf16[16,32], index: 0, kind: input, shape index: {}]
  %s1 = inlined_call_operand.vmem [shape: bf16[32,32], index: 1, kind: input, shape index: {}]
  %s2 = inlined_call_operand.vmem [shape: f32[1,32], index: 2, kind: input, shape index: {}]
  %s3 = inlined_call_operand.vmem [shape: f32[16,32], index: 3, kind: input, shape index: {}]
  %s4 = inlined_call_operand.vmem [shape: f32[16,32], index: 4, kind: output, shape index: {}]
  %s5 = sld [smem:[#allocation0]]
  $region34: #{bert_forward.13} parent=0
    _
  %s7 = ssub.s32 1, %s5
  %s8 = scalar_select 0, %s7, %s5
  // Predicated region
  $region2: #{bert_forward.13} parent=0 // pred_check
    _
  $region3: #{bert_forward.13} parent=0 // pred_check_branch
    %10 = sbr.rel (0) target = $region5
  $region4: #{bert_forward.13} parent=0 // pred_region
    _
  $region5: #{bert_forward.13} parent=0 // pred_fallthru
    _
  // Predicated region
  $region6: #{bert_forward.13} parent=0 // pred_check
    _
  $region7: #{bert_forward.13} parent=0 // pred_check_branch
    %12 = sbr.rel (0) target = $region9
  $region8: #{bert_forward.13} parent=0 // pred_region
    _
  $region9: #{bert_forward.13} parent=0 // pred_fallthru
    _
  // Predicated region
  $region10: #{bert_forward.13} parent=0 // pred_check
    _
  $region11: #{bert_forward.13} parent=0 // pred_check_branch
    %14 = sbr.rel (0) target = $region13
  $region12: #{bert_forward.13} parent=0 // pred_region
    _
  $region13: #{bert_forward.13} parent=0 // pred_fallthru
    _
  // Predicated region
  $region14: #{bert_forward.13} parent=0 // pred_check
    _
  $region15: #{bert_forward.13} parent=0 // pred_check_branch
    %16 = sbr.rel (0) target = $region17
  $region16: #{bert_forward.13} parent=0 // pred_region
    _
  $region17: #{bert_forward.13} parent=0 // pred_fallthru
    _
  %p18 = scmp.eq.s32.totalorder 0, 0
  // Predicated region
  $region18: #{bert_forward.13} parent=0 // pred_check
    %p19 = pneg %p18
  $region19: #{bert_forward.13} parent=0 // pred_check_branch
    %21 = sbr.rel (%p19) target = $region21
  $region20: #{bert_forward.13} parent=0 // pred_region
    %vm22 = vcmask 261120
    %23 = vst.msk [vmem:[#allocation2] sm:$0xff] %vm22, 0.0
    %24 = vst.msk [vmem:[#allocation2 + $0x8] sm:$0xff] %vm22, 0.0
  $region21: #{bert_forward.13} parent=0 // pred_fallthru
    _
  %v25 = vld [vmem:[#allocation2] sm:$0xff]
  %v26 = vld [vmem:[#allocation2 + $0x8] sm:$0xff]
  %v27 = vld [vmem:[%s0] sm:$0xf]
  %v28 = vld [vmem:[%s0 + $0x4] sm:$0xf]
  %v29 = vld [vmem:[%s1] sm:$0xf]
  %v30 = vld [vmem:[%s1 + $0x4] sm:$0xf]
  %v31 = vld [vmem:[%s1 + $0x8] sm:$0xf]
  %v32 = vld [vmem:[%s1 + $0xc] sm:$0xf]
  %v35 = vunpack.c.l.b16 %v27
  %v36 = vunpack.c.l.b16 %v28
  %v37 = vpack.c.b16 %v36, %v35
  %v42 = vunpack.c.l.b16 %v29
  %v43 = vunpack.c.l.b16 %v30
  %v44 = vunpack.c.l.b16 %v31
  %v45 = vunpack.c.l.b16 %v32
  %v46 = vpack.c.b16 %v43, %v42
  %v47 = vpack.c.b16 %v45, %v44
  %vm50 = vcmask 261120
  %v52 = vsel %vm50, %v37, 0
  %54 = vmatprep.subr.bf16.mxu0 0
  %55 = vmatpush1.bf16.msra.mxu0 %v46
  %56 = vmatprep.subr.bf16.mxu0 0
  %57 = vmatpush1.bf16.msra.mxu0 %v47
  %58 = vmatprep.subr.bf16.mxu0 0
  %59 = vmatpush1.bf16.msra.mxu0 0
  %60 = vmatprep.subr.bf16.mxu0 0
  %61 = vmatpush1.bf16.msra.mxu0 0
  %62 = vmatprep.subr.bf16.mxu0 0
  %63 = vmatpush1.bf16.msra.mxu0 0
  %64 = vmatprep.subr.bf16.mxu0 0
  %65 = vmatpush1.bf16.msra.mxu0 0
  %66 = vmatprep.subr.bf16.mxu0 0
  %67 = vmatpush1.bf16.msra.mxu0 0
  %68 = vmatprep.subr.bf16.mxu0 0
  %69 = vmatpush1.bf16.msra.mxu0 0
  %70 = vmatprep.subr.bf16.mxu0 0
  %71 = vmatpush1.bf16.msra.mxu0 0
  %72 = vmatprep.subr.bf16.mxu0 0
  %73 = vmatpush1.bf16.msra.mxu0 0
  %74 = vmatprep.subr.bf16.mxu0 0
  %75 = vmatpush1.bf16.msra.mxu0 0
  %76 = vmatprep.subr.bf16.mxu0 0
  %77 = vmatpush1.bf16.msra.mxu0 0
  %78 = vmatprep.subr.bf16.mxu0 0
  %79 = vmatpush1.bf16.msra.mxu0 0
  %80 = vmatprep.subr.bf16.mxu0 0
  %81 = vmatpush1.bf16.msra.mxu0 0
  %82 = vmatprep.subr.bf16.mxu0 0
  %83 = vmatpush1.bf16.msra.mxu0 0
  %84 = vmatprep.subr.bf16.mxu0 0
  %85 = vmatpush1.bf16.msra.mxu0 0
  %86 = vmatprep.mubr.bf16.mxu0 0
  %87 = vmatmul.mubr.bf16.gmra.mrb[0].mxu0 %v52
  %v88 = vpop.f32.mrb[0].mxu0
  %v89 = vadd.f32 0.0, %v88
  %v90 = vpop.f32.mrb[0].mxu0
  %v91 = vpop.f32.mrb[0].mxu0
  %v92 = vadd.f32 0.0, %v91
  %v93 = vpop.f32.mrb[0].mxu0
  %94 = vdwg.mxu0
  %v95 = vadd.f32 %v25, %v89
  %v96 = vadd.f32 %v26, %v92
  %97 = vst.msk [vmem:[#allocation2] sm:$0xff] %vm50, %v95
  %98 = vst.msk [vmem:[#allocation2 + $0x8] sm:$0xff] %vm50, %v96
  // Predicated region
  $region22: #{bert_forward.13} parent=0 // pred_check
    %p99 = pneg %p18
  $region23: #{bert_forward.13} parent=0 // pred_check_branch
    %101 = sbr.rel (%p99) target = $region25
  $region24: #{bert_forward.13} parent=0 // pred_region
    %v102 = vld [vmem:[#allocation2] sm:$0xff]
    %v103 = vld [vmem:[#allocation2 + $0x8] sm:$0xff]
    %v104 = vld [vmem:[%s2] sm:$0x1]
    %v106 = vlaneseq
    %v107 = vshrl.u32 %v106, 7
    %v108 = vsub.s32 0, %v107
    %v109 = vrot.slane %v104, %v108
    %v111 = vadd.f32 %v102, %v109
    %v112 = vadd.f32 %v103, %v109
    %v113 = vld [vmem:[%s3] sm:$0xff]
    %v114 = vld [vmem:[%s3 + $0x8] sm:$0xff]
    %v115 = vadd.f32 %v111, %v113
    %v116 = vadd.f32 %v112, %v114
    %117 = vst.msk [vmem:[%s4] sm:$0xff] %vm50, %v115
    %118 = vst.msk [vmem:[%s4 + $0x8] sm:$0xff] %vm50, %v116
  $region25: #{bert_forward.13} parent=0 // pred_fallthru
    _
  // Predicated region
  $region26: #{bert_forward.13} parent=0 // pred_check
    _
  $region27: #{bert_forward.13} parent=0 // pred_check_branch
    %120 = sbr.rel (0) target = $region29
  $region28: #{bert_forward.13} parent=0 // pred_region
    _
  $region29: #{bert_forward.13} parent=0 // pred_fallthru
    _
  // Predicated region
  $region30: #{bert_forward.13} parent=0 // pred_check
    _
  $region31: #{bert_forward.13} parent=0 // pred_check_branch
    %122 = sbr.rel (0) target = $region33
  $region32: #{bert_forward.13} parent=0 // pred_region
    _
  $region33: #{bert_forward.13} parent=0 // pred_fallthru
    _

// kernel: bert_forward.12
$region0: #{bert_forward.12}
  #allocation0 [shape = 'u32[]', space=smem, size = 0x4, offset = 0x4, fixed_abs, tag = 'smem constant byte address 0x4 - core index']
  #allocation1 [shape = 'u32[144,128]{1,0:T(1,128)}', space=vmem, size = 0x12000, scoped, tag = 'internal scratch']
  %s0 = inlined_call_operand.vmem [shape: bf16[2,8,96], index: 0, kind: input, shape index: {}, may-alias: {0,1}]
  %s1 = inlined_call_operand.vmem [shape: bf16[2,8,96], index: 1, kind: input, shape index: {}, may-alias: {0,1}]
  %s2 = inlined_call_operand.vmem [shape: f32[2,8,8], index: 2, kind: input, shape index: {}]
  %s3 = inlined_call_operand.vmem [shape: bf16[2,8,32], index: 3, kind: output, shape index: {}]
  %s4 = sld [smem:[#allocation0]]
  $region45: #{bert_forward.12} parent=0
    _
  %s6 = ssub.s32 1, %s4
  %s7 = scalar_select 0, %s6, %s4
  loop: start=0, step=1, limit=4
  $region2: #{bert_forward.12} parent=0 // loop_pre_header
    _
  $region3: #{bert_forward.12} parent=0 // loop_header
    %s9 = sphi 0, %s13
    %p10 = scmp.ge.s32.totalorder %s9, 4
    %s16 = sphi 0, %s28
    %s17 = sphi 0, %s24
    %s18 = sphi 0, %s16
    %s19 = sphi 0, %s17
    %s20 = sphi 0, %s18
    %s21 = sphi 0, %s19
    %s33 = sphi 0, %s35
    %s36 = sphi 0, %s33
    %s37 = sphi 0, %s36
    %s53 = sphi 0, %s37
    %s59 = sphi 0, %s61
    %s62 = sphi 0, %s59
    %s63 = sphi 0, %s62
    %s79 = sphi 0, %s63
    %s87 = sphi 0, %s89
    %s90 = sphi 0, %s87
    %s91 = sphi 0, %s90
    %s107 = sphi 0, %s91
    %s115 = sphi 0, %s117
    %s118 = sphi 0, %s115
    %s119 = sphi 0, %s118
    %s135 = sphi 0, %s119
  $region4: #{bert_forward.12} parent=0 // loop_header_branch
    %12 = sbr.rel (%p10) target = $region8
  $region5: #{bert_forward.12} parent=0 // loop_body
    %s14 = ssub.s32 %s9, 1
    %s15 = ssub.s32 %s9, 2
    %s22 = sadd.s32 1, %s17
    %p23 = scmp.ge.s32.totalorder %s22, 1
    %s24 = scalar_select %p23, 0, %s22
    %s25 = sadd.s32 1, %s16
    %s26 = scalar_select %p23, %s25, %s16
    %p27 = scmp.ge.s32.totalorder %s26, 2
    %s28 = scalar_select %p27, 0, %s26
    %s29 = ssub.s32 %s16, %s28
    %s30 = ssub.s32 %s17, %s24
    %s31 = sor.u32 %s29, %s30
    %p32 = scmp.eq.s32.totalorder %s31, 0
    %s34 = sadd.s32 %s33, 1
    %s35 = scalar_select %p32, %s33, %s34
    %p38 = pneg %p32
    %p39 = scmp.eq.s32.totalorder %s9, 1
    %p40 = por %p38, %p39
    %p41 = scmp.ne.s32.totalorder %s33, %s36
    %p42 = scmp.eq.s32.totalorder %s9, 0
    %p43 = por %p41, %p42
    %p44 = scmp.ne.s32.totalorder %s33, %s36
    %p45 = scmp.eq.s32.totalorder %s14, 1
    %p46 = por %p44, %p45
    %p47 = scmp.ne.s32.totalorder %s36, %s37
    %p48 = scmp.eq.s32.totalorder %s14, 0
    %p49 = por %p47, %p48
    %p50 = scmp.ne.s32.totalorder %s36, %s37
    %p51 = scmp.eq.s32.totalorder %s15, 1
    %p52 = por %p50, %p51
    %p54 = scmp.ne.s32.totalorder %s37, %s53
    %p55 = scmp.eq.s32.totalorder %s15, 0
    %p56 = por %p54, %p55
    %s57 = ssub.s32 %s16, %s28
    %p58 = scmp.eq.s32.totalorder %s57, 0
    %s60 = sadd.s32 %s59, 1
    %s61 = scalar_select %p58, %s59, %s60
    %p64 = pneg %p58
    %p65 = scmp.eq.s32.totalorder %s9, 1
    %p66 = por %p64, %p65
    %p67 = scmp.ne.s32.totalorder %s59, %s62
    %p68 = scmp.eq.s32.totalorder %s9, 0
    %p69 = por %p67, %p68
    %p70 = scmp.ne.s32.totalorder %s59, %s62
    %p71 = scmp.eq.s32.totalorder %s14, 1
    %p72 = por %p70, %p71
    %p73 = scmp.ne.s32.totalorder %s62, %s63
    %p74 = scmp.eq.s32.totalorder %s14, 0
    %p75 = por %p73, %p74
    %p76 = scmp.ne.s32.totalorder %s62, %s63
    %p77 = scmp.eq.s32.totalorder %s15, 1
    %p78 = por %p76, %p77
    %p80 = scmp.ne.s32.totalorder %s63, %s79
    %p81 = scmp.eq.s32.totalorder %s15, 0
    %p82 = por %p80, %p81
    %s83 = ssub.s32 %s16, %s28
    %s84 = ssub.s32 %s17, %s24
    %s85 = sor.u32 %s83, %s84
    %p86 = scmp.eq.s32.totalorder %s85, 0
    %s88 = sadd.s32 %s87, 1
    %s89 = scalar_select %p86, %s87, %s88
    %p92 = pneg %p86
    %p93 = scmp.eq.s32.totalorder %s9, 1
    %p94 = por %p92, %p93
    %p95 = scmp.ne.s32.totalorder %s87, %s90
    %p96 = scmp.eq.s32.totalorder %s9, 0
    %p97 = por %p95, %p96
    %p98 = scmp.ne.s32.totalorder %s87, %s90
    %p99 = scmp.eq.s32.totalorder %s14, 1
    %p100 = por %p98, %p99
    %p101 = scmp.ne.s32.totalorder %s90, %s91
    %p102 = scmp.eq.s32.totalorder %s14, 0
    %p103 = por %p101, %p102
    %p104 = scmp.ne.s32.totalorder %s90, %s91
    %p105 = scmp.eq.s32.totalorder %s15, 1
    %p106 = por %p104, %p105
    %p108 = scmp.ne.s32.totalorder %s91, %s107
    %p109 = scmp.eq.s32.totalorder %s15, 0
    %p110 = por %p108, %p109
    %s111 = ssub.s32 %s16, %s28
    %s112 = ssub.s32 %s17, %s24
    %s113 = sor.u32 %s111, %s112
    %p114 = scmp.eq.s32.totalorder %s113, 0
    %s116 = sadd.s32 %s115, 1
    %s117 = scalar_select %p114, %s115, %s116
    %p120 = pneg %p114
    %p121 = scmp.eq.s32.totalorder %s9, 1
    %p122 = por %p120, %p121
    %p123 = scmp.ne.s32.totalorder %s115, %s118
    %p124 = scmp.eq.s32.totalorder %s9, 0
    %p125 = por %p123, %p124
    %p126 = scmp.ne.s32.totalorder %s115, %s118
    %p127 = scmp.eq.s32.totalorder %s14, 1
    %p128 = por %p126, %p127
    %p129 = scmp.ne.s32.totalorder %s118, %s119
    %p130 = scmp.eq.s32.totalorder %s14, 0
    %p131 = por %p129, %p130
    %p132 = scmp.ne.s32.totalorder %s118, %s119
    %p133 = scmp.eq.s32.totalorder %s15, 1
    %p134 = por %p132, %p133
    %p136 = scmp.ne.s32.totalorder %s119, %s135
    %p137 = scmp.eq.s32.totalorder %s15, 0
    %p138 = por %p136, %p137
    %p139 = scmp.le.s32.totalorder 1, %s9
    %p140 = scmp.lt.s32.totalorder %s9, 3
    %p141 = pnand %p139, %p140
    %p142 = pneg %p141
    // Predicated region
    $region9: #{bert_forward.12} parent=5 // pred_check
      _
    $region10: #{bert_forward.12} parent=5 // pred_check_branch
      %144 = sbr.rel (%p141) target = $region12
    $region11: #{bert_forward.12} parent=5 // pred_region
      %s145 = ssub.s32 %s9, 1
    $region12: #{bert_forward.12} parent=5 // pred_fallthru
      _
    %p146 = scmp.lt.s32.totalorder %s9, 2
    // Predicated region
    $region13: #{bert_forward.12} parent=5 // pred_check
      %p147 = pneg %p146
    $region14: #{bert_forward.12} parent=5 // pred_check_branch
      %149 = sbr.rel (%p147) target = $region16
    $region15: #{bert_forward.12} parent=5 // pred_region
      // Predicated region
      $region17: #{bert_forward.12} parent=15 // pred_check
        %p150 = pneg %p43
      $region18: #{bert_forward.12} parent=15 // pred_check_branch
        %152 = sbr.rel (%p150) target = $region20
      $region19: #{bert_forward.12} parent=15 // pred_region
        %p153 = scmp.lt.s32.totalorder %s16, 1
        %s154 = scalar_select %p153, %s16, 1
        %p155 = scmp.lt.s32.totalorder %s17, 0
        %s156 = scalar_select %p155, %s17, 0
        %s157 = sadd.s32 %s156, %s154
        %s158 = smul.addr %s157, 4
        %s159 = scalar_lea.vmem %s0, %s158
      $region20: #{bert_forward.12} parent=15 // pred_fallthru
        _
      // Predicated region
      $region21: #{bert_forward.12} parent=15 // pred_check
        %p160 = pneg %p69
      $region22: #{bert_forward.12} parent=15 // pred_check_branch
        %162 = sbr.rel (%p160) target = $region24
      $region23: #{bert_forward.12} parent=15 // pred_region
        %p163 = scmp.lt.s32.totalorder %s16, 1
        %s164 = scalar_select %p163, %s16, 1
        %s165 = smul.addr %s164, 4
        %s166 = scalar_lea.vmem %s1, %s165
      $region24: #{bert_forward.12} parent=15 // pred_fallthru
        _
      // Predicated region
      $region25: #{bert_forward.12} parent=15 // pred_check
        %p167 = pneg %p97
      $region26: #{bert_forward.12} parent=15 // pred_check_branch
        %169 = sbr.rel (%p167) target = $region28
      $region27: #{bert_forward.12} parent=15 // pred_region
        %p170 = scmp.lt.s32.totalorder %s16, 1
        %s171 = scalar_select %p170, %s16, 1
        %p172 = scmp.lt.s32.totalorder %s17, 0
        %s173 = scalar_select %p172, %s17, 0
        %s174 = sadd.s32 %s173, %s171
        %s175 = smul.addr %s174, 8
        %s176 = scalar_lea.vmem %s2, %s175
      $region28: #{bert_forward.12} parent=15 // pred_fallthru
        _
    $region16: #{bert_forward.12} parent=5 // pred_fallthru
      _
    %p177 = scmp.le.s32.totalorder 1, %s9
    %p178 = scmp.lt.s32.totalorder %s9, 3
    %p179 = pnand %p177, %p178
    %p180 = pneg %p179
    // Predicated region
    $region29: #{bert_forward.12} parent=5 // pred_check
      _
    $region30: #{bert_forward.12} parent=5 // pred_check_branch
      %182 = sbr.rel (%p179) target = $region32
    $region31: #{bert_forward.12} parent=5 // pred_region
      %s183 = ssub.s32 %s9, 1
      %p184 = scmp.lt.s32.totalorder %s18, 1
      %s185 = scalar_select %p184, %s18, 1
      %p186 = scmp.lt.s32.totalorder %s19, 0
      %s187 = scalar_select %p186, %s19, 0
      %s188 = sadd.s32 %s187, %s185
      %s189 = smul.addr %s188, 4
      %s190 = scalar_lea.vmem %s0, %s189
      %p191 = pneg %p49
      %p192 = pneg %p46
      %p193 = scmp.lt.s32.totalorder %s18, 1
      %s194 = scalar_select %p193, %s18, 1
      %s195 = smul.addr %s194, 4
      %s196 = scalar_lea.vmem %s1, %s195
      %p197 = pneg %p75
      %p198 = pneg %p72
      %p199 = scmp.lt.s32.totalorder %s18, 1
      %s200 = scalar_select %p199, %s18, 1
      %p201 = scmp.lt.s32.totalorder %s19, 0
      %s202 = scalar_select %p201, %s19, 0
      %s203 = sadd.s32 %s202, %s200
      %s204 = smul.addr %s203, 8
      %s205 = scalar_lea.vmem %s2, %s204
      %p206 = pneg %p103
      %p207 = pneg %p100
      %p208 = pneg %p131
      %p209 = pneg %p128
      %p210 = scmp.lt.s32.totalorder %s18, 1
      %s211 = scalar_select %p210, %s18, 1
      %p212 = scmp.lt.s32.totalorder %s19, 0
      %s213 = scalar_select %p212, %s19, 0
      %s214 = sadd.s32 %s213, %s211
      %s215 = smul.addr %s214, 4
      %s216 = scalar_lea.vmem %s3, %s215
      %p217 = scmp.lt.s32.totalorder %s18, 1
      %s218 = scalar_select %p217, %s18, 1
      %p219 = scmp.lt.s32.totalorder %s19, 0
      %s220 = scalar_select %p219, %s19, 0
      %s221 = sadd.s32 %s220, %s218
      %s222 = smul.addr %s221, 4
      %s223 = scalar_lea.vmem %s0, %s222
      %p224 = scmp.lt.s32.totalorder %s18, 1
      %s225 = scalar_select %p224, %s18, 1
      %s226 = smul.addr %s225, 4
      %s227 = scalar_lea.vmem %s1, %s226
      %p228 = scmp.lt.s32.totalorder %s18, 1
      %s229 = scalar_select %p228, %s18, 1
      %p230 = scmp.lt.s32.totalorder %s19, 0
      %s231 = scalar_select %p230, %s19, 0
      %s232 = sadd.s32 %s231, %s229
      %s233 = smul.addr %s232, 8
      %s234 = scalar_lea.vmem %s2, %s233
      %p235 = scmp.lt.s32.totalorder %s18, 1
      %s236 = scalar_select %p235, %s18, 1
      %p237 = scmp.lt.s32.totalorder %s19, 0
      %s238 = scalar_select %p237, %s19, 0
      %s239 = sadd.s32 %s238, %s236
      %s240 = smul.addr %s239, 4
      %s241 = scalar_lea.vmem %s3, %s240
      %v243 = vld [vmem:[%s223] sm:$0xf]
      %v244 = vld [vmem:[%s227] sm:$0xf]
      %v245 = vld [vmem:[%s234] sm:$0xff]
      %v247 = vunpack.c.l.b16 %v244
      %v248 = vpack.c.b16 %v247, %v247
      %249 = vrot.lane.b32.xlu0 %v248, 96
      %v250 = vpop.permute.xlu0 %249
      %vm251 = vcmask 64512
      %v253 = vsel %vm251, %v243, 0
      %v256 = vsel %vm251, %v250, 0
      %258 = vmatprep.subr.bf16.mxu0 0
      %259 = vmatpush1.bf16.xpose.msra.mxu0 %v256
      %260 = vmatprep.subr.bf16.mxu0 0
      %261 = vmatpush1.bf16.xpose.msra.mxu0 0
      %262 = vmatprep.subr.bf16.mxu0 0
      %263 = vmatpush1.bf16.xpose.msra.mxu0 0
      %264 = vmatprep.subr.bf16.mxu0 0
      %265 = vmatpush1.bf16.xpose.msra.mxu0 0
      %266 = vmatprep.subr.bf16.mxu0 0
      %267 = vmatpush1.bf16.xpose.msra.mxu0 0
      %268 = vmatprep.subr.bf16.mxu0 0
      %269 = vmatpush1.bf16.xpose.msra.mxu0 0
      %270 = vmatprep.subr.bf16.mxu0 0
      %271 = vmatpush1.bf16.xpose.msra.mxu0 0
      %272 = vmatprep.subr.bf16.mxu0 0
      %273 = vmatpush1.bf16.xpose.msra.mxu0 0
      %274 = vmatprep.subr.bf16.mxu0 0
      %275 = vmatpush1.bf16.xpose.msra.mxu0 0
      %276 = vmatprep.subr.bf16.mxu0 0
      %277 = vmatpush1.bf16.xpose.msra.mxu0 0
      %278 = vmatprep.subr.bf16.mxu0 0
      %279 = vmatpush1.bf16.xpose.msra.mxu0 0
      %280 = vmatprep.subr.bf16.mxu0 0
      %281 = vmatpush1.bf16.xpose.msra.mxu0 0
      %282 = vmatprep.subr.bf16.mxu0 0
      %283 = vmatpush1.bf16.xpose.msra.mxu0 0
      %284 = vmatprep.subr.bf16.mxu0 0
      %285 = vmatpush1.bf16.xpose.msra.mxu0 0
      %286 = vmatprep.subr.bf16.mxu0 0
      %287 = vmatpush1.bf16.xpose.msra.mxu0 0
      %288 = vmatprep.subr.bf16.mxu0 0
      %289 = vmatpush1.bf16.xpose.msra.mxu0 0
      %290 = vmatprep.mubr.bf16.mxu0 0
      %291 = vmatmul.mubr.bf16.gmra.mrb[0].mxu0 %v253
      %v292 = vpop.f32.mrb[0].mxu0
      %v293 = vadd.f32 %v245, %v292
      %v294 = vpop.f32.mrb[0].mxu0
      %v295 = vpop.f32.mrb[0].mxu0
      %v296 = vpop.f32.mrb[0].mxu0
      %297 = vdwg.mxu0
      %v298 = vsel %vm251, %v293, -inf
      %299 = vmax.xlane.f32.xlu0 %v298
      %v300 = vpop.xlane.xlu0 %299
      %v301 = vsub.f32 %v293, %v300
      %v302 = vmul.f32 %v301, 1.442695
      %v303 = vpow.pop %v302
      %v304 = vsel %vm251, %v303, 0.0
      %305 = vadd.xlane.f32.xlu0 %v304
      %v306 = vpop.xlane.xlu0 %305
      %v307 = vrcp.pop %v306
      %v308 = vmul.f32 %v303, %v307
      %v309 = vpack.c.bf16 %v308, %v308
      %310 = vrot.lane.b32.xlu0 %v248, 64
      %v311 = vpop.permute.xlu0 %310
      %v313 = vsel %vm251, %v309, 0
      %vm315 = vcmask 1043456
      %v317 = vsel %vm315, %v311, 0
      %319 = vmatprep.subr.bf16.mxu0 0
      %320 = vmatpush1.bf16.msra.mxu0 %v317
      %321 = vmatprep.subr.bf16.mxu0 0
      %322 = vmatpush1.bf16.msra.mxu0 0
      %323 = vmatprep.subr.bf16.mxu0 0
      %324 = vmatpush1.bf16.msra.mxu0 0
      %325 = vmatprep.subr.bf16.mxu0 0
      %326 = vmatpush1.bf16.msra.mxu0 0
      %327 = vmatprep.subr.bf16.mxu0 0
      %328 = vmatpush1.bf16.msra.mxu0 0
      %329 = vmatprep.subr.bf16.mxu0 0
      %330 = vmatpush1.bf16.msra.mxu0 0
      %331 = vmatprep.subr.bf16.mxu0 0
      %332 = vmatpush1.bf16.msra.mxu0 0
      %333 = vmatprep.subr.bf16.mxu0 0
      %334 = vmatpush1.bf16.msra.mxu0 0
      %335 = vmatprep.subr.bf16.mxu0 0
      %336 = vmatpush1.bf16.msra.mxu0 0
      %337 = vmatprep.subr.bf16.mxu0 0
      %338 = vmatpush1.bf16.msra.mxu0 0
      %339 = vmatprep.subr.bf16.mxu0 0
      %340 = vmatpush1.bf16.msra.mxu0 0
      %341 = vmatprep.subr.bf16.mxu0 0
      %342 = vmatpush1.bf16.msra.mxu0 0
      %343 = vmatprep.subr.bf16.mxu0 0
      %344 = vmatpush1.bf16.msra.mxu0 0
      %345 = vmatprep.subr.bf16.mxu0 0
      %346 = vmatpush1.bf16.msra.mxu0 0
      %347 = vmatprep.subr.bf16.mxu0 0
      %348 = vmatpush1.bf16.msra.mxu0 0
      %349 = vmatprep.subr.bf16.mxu0 0
      %350 = vmatpush1.bf16.msra.mxu0 0
      %351 = vmatprep.mubr.bf16.mxu0 0
      %352 = vmatmul.mubr.bf16.gmra.mrb[0].mxu0 %v313
      %v353 = vpop.f32.mrb[0].mxu0
      %v354 = vadd.f32 0.0, %v353
      %v355 = vpop.f32.mrb[0].mxu0
      %v356 = vpop.f32.mrb[0].mxu0
      %v357 = vpop.f32.mrb[0].mxu0
      %358 = vdwg.mxu0
      %v360 = vunpack.c.l.b16 %v243
      %v361 = vpack.c.b16 %v360, %v360
      %362 = vrot.lane.b32.xlu0 %v361, 120
      %v363 = vpop.permute.xlu0 %362
      %364 = vrot.lane.b32.xlu0 %v248, 88
      %v365 = vpop.permute.xlu0 %364
      %v367 = vsel %vm251, %v363, 0
      %v370 = vsel %vm251, %v365, 0
      %372 = vmatprep.subr.bf16.mxu0 0
      %373 = vmatpush1.bf16.xpose.msra.mxu0 %v370
      %374 = vmatprep.subr.bf16.mxu0 0
      %375 = vmatpush1.bf16.xpose.msra.mxu0 0
      %376 = vmatprep.subr.bf16.mxu0 0
      %377 = vmatpush1.bf16.xpose.msra.mxu0 0
      %378 = vmatprep.subr.bf16.mxu0 0
      %379 = vmatpush1.bf16.xpose.msra.mxu0 0
      %380 = vmatprep.subr.bf16.mxu0 0
      %381 = vmatpush1.bf16.xpose.msra.mxu0 0
      %382 = vmatprep.subr.bf16.mxu0 0
      %383 = vmatpush1.bf16.xpose.msra.mxu0 0
      %384 = vmatprep.subr.bf16.mxu0 0
      %385 = vmatpush1.bf16.xpose.msra.mxu0 0
      %386 = vmatprep.subr.bf16.mxu0 0
      %387 = vmatpush1.bf16.xpose.msra.mxu0 0
      %388 = vmatprep.subr.bf16.mxu0 0
      %389 = vmatpush1.bf16.xpose.msra.mxu0 0
      %390 = vmatprep.subr.bf16.mxu0 0
      %391 = vmatpush1.bf16.xpose.msra.mxu0 0
      %392 = vmatprep.subr.bf16.mxu0 0
      %393 = vmatpush1.bf16.xpose.msra.mxu0 0
      %394 = vmatprep.subr.bf16.mxu0 0
      %395 = vmatpush1.bf16.xpose.msra.mxu0 0
      %396 = vmatprep.subr.bf16.mxu0 0
      %397 = vmatpush1.bf16.xpose.msra.mxu0 0
      %398 = vmatprep.subr.bf16.mxu0 0
      %399 = vmatpush1.bf16.xpose.msra.mxu0 0
      %400 = vmatprep.subr.bf16.mxu0 0
      %401 = vmatpush1.bf16.xpose.msra.mxu0 0
      %402 = vmatprep.subr.bf16.mxu0 0
      %403 = vmatpush1.bf16.xpose.msra.mxu0 0
      %404 = vmatprep.mubr.bf16.mxu0 0
      %405 = vmatmul.mubr.bf16.gmra.mrb[0].mxu0 %v367
      %v406 = vpop.f32.mrb[0].mxu0
      %v407 = vadd.f32 %v245, %v406
      %v408 = vpop.f32.mrb[0].mxu0
      %v409 = vpop.f32.mrb[0].mxu0
      %v410 = vpop.f32.mrb[0].mxu0
      %411 = vdwg.mxu0
      %v412 = vsel %vm251, %v407, -inf
      %413 = vmax.xlane.f32.xlu0 %v412
      %v414 = vpop.xlane.xlu0 %413
      %v415 = vsub.f32 %v407, %v414
      %v416 = vmul.f32 %v415, 1.442695
      %v417 = vpow.pop %v416
      %v418 = vsel %vm251, %v417, 0.0
      %419 = vadd.xlane.f32.xlu0 %v418
      %v420 = vpop.xlane.xlu0 %419
      %v421 = vrcp.pop %v420
      %v422 = vmul.f32 %v417, %v421
      %v423 = vpack.c.bf16 %v422, %v422
      %424 = vrot.lane.b32.xlu0 %v248, 56
      %v425 = vpop.permute.xlu0 %424
      %v427 = vsel %vm251, %v423, 0
      %v430 = vsel %vm315, %v425, 0
      %432 = vmatprep.subr.bf16.mxu0 0
      %433 = vmatpush1.bf16.msra.mxu0 %v430
      %434 = vmatprep.subr.bf16.mxu0 0
      %435 = vmatpush1.bf16.msra.mxu0 0
      %436 = vmatprep.subr.bf16.mxu0 0
      %437 = vmatpush1.bf16.msra.mxu0 0
      %438 = vmatprep.subr.bf16.mxu0 0
      %439 = vmatpush1.bf16.msra.mxu0 0
      %440 = vmatprep.subr.bf16.mxu0 0
      %441 = vmatpush1.bf16.msra.mxu0 0
      %442 = vmatprep.subr.bf16.mxu0 0
      %443 = vmatpush1.bf16.msra.mxu0 0
      %444 = vmatprep.subr.bf16.mxu0 0
      %445 = vmatpush1.bf16.msra.mxu0 0
      %446 = vmatprep.subr.bf16.mxu0 0
      %447 = vmatpush1.bf16.msra.mxu0 0
      %448 = vmatprep.subr.bf16.mxu0 0
      %449 = vmatpush1.bf16.msra.mxu0 0
      %450 = vmatprep.subr.bf16.mxu0 0
      %451 = vmatpush1.bf16.msra.mxu0 0
      %452 = vmatprep.subr.bf16.mxu0 0
      %453 = vmatpush1.bf16.msra.mxu0 0
      %454 = vmatprep.subr.bf16.mxu0 0
      %455 = vmatpush1.bf16.msra.mxu0 0
      %456 = vmatprep.subr.bf16.mxu0 0
      %457 = vmatpush1.bf16.msra.mxu0 0
      %458 = vmatprep.subr.bf16.mxu0 0
      %459 = vmatpush1.bf16.msra.mxu0 0
      %460 = vmatprep.subr.bf16.mxu0 0
      %461 = vmatpush1.bf16.msra.mxu0 0
      %462 = vmatprep.subr.bf16.mxu0 0
      %463 = vmatpush1.bf16.msra.mxu0 0
      %464 = vmatprep.mubr.bf16.mxu0 0
      %465 = vmatmul.mubr.bf16.gmra.mrb[0].mxu0 %v427
      %v466 = vpop.f32.mrb[0].mxu0
      %v467 = vadd.f32 0.0, %v466
      %v468 = vpop.f32.mrb[0].mxu0
      %v469 = vpop.f32.mrb[0].mxu0
      %v470 = vpop.f32.mrb[0].mxu0
      %471 = vdwg.mxu0
      %472 = vrot.lane.b32.xlu0 %v361, 112
      %v473 = vpop.permute.xlu0 %472
      %474 = vrot.lane.b32.xlu0 %v248, 80
      %v475 = vpop.permute.xlu0 %474
      %v477 = vsel %vm251, %v473, 0
      %v480 = vsel %vm251, %v475, 0
      %482 = vmatprep.subr.bf16.mxu0 0
      %483 = vmatpush1.bf16.xpose.msra.mxu0 %v480
      %484 = vmatprep.subr.bf16.mxu0 0
      %485 = vmatpush1.bf16.xpose.msra.mxu0 0
      %486 = vmatprep.subr.bf16.mxu0 0
      %487 = vmatpush1.bf16.xpose.msra.mxu0 0
      %488 = vmatprep.subr.bf16.mxu0 0
      %489 = vmatpush1.bf16.xpose.msra.mxu0 0
      %490 = vmatprep.subr.bf16.mxu0 0
      %491 = vmatpush1.bf16.xpose.msra.mxu0 0
      %492 = vmatprep.subr.bf16.mxu0 0
      %493 = vmatpush1.bf16.xpose.msra.mxu0 0
      %494 = vmatprep.subr.bf16.mxu0 0
      %495 = vmatpush1.bf16.xpose.msra.mxu0 0
      %496 = vmatprep.subr.bf16.mxu0 0
      %497 = vmatpush1.bf16.xpose.msra.mxu0 0
      %498 = vmatprep.subr.bf16.mxu0 0
      %499 = vmatpush1.bf16.xpose.msra.mxu0 0
      %500 = vmatprep.subr.bf16.mxu0 0
      %501 = vmatpush1.bf16.xpose.msra.mxu0 0
      %502 = vmatprep.subr.bf16.mxu0 0
      %503 = vmatpush1.bf16.xpose.msra.mxu0 0
      %504 = vmatprep.subr.bf16.mxu0 0
      %505 = vmatpush1.bf16.xpose.msra.mxu0 0
      %506 = vmatprep.subr.bf16.mxu0 0
      %507 = vmatpush1.bf16.xpose.msra.mxu0 0
      %508 = vmatprep.subr.bf16.mxu0 0
      %509 = vmatpush1.bf16.xpose.msra.mxu0 0
      %510 = vmatprep.subr.bf16.mxu0 0
      %511 = vmatpush1.bf16.xpose.msra.mxu0 0
      %512 = vmatprep.subr.bf16.mxu0 0
      %513 = vmatpush1.bf16.xpose.msra.mxu0 0
      %514 = vmatprep.mubr.bf16.mxu0 0
      %515 = vmatmul.mubr.bf16.gmra.mrb[0].mxu0 %v477
      %v516 = vpop.f32.mrb[0].mxu0
      %v517 = vadd.f32 %v245, %v516
      %v518 = vpop.f32.mrb[0].mxu0
      %v519 = vpop.f32.mrb[0].mxu0
      %v520 = vpop.f32.mrb[0].mxu0
      %521 = vdwg.mxu0
      %v522 = vsel %vm251, %v517, -inf
      %523 = vmax.xlane.f32.xlu0 %v522
      %v524 = vpop.xlane.xlu0 %523
      %v525 = vsub.f32 %v517, %v524
      %v526 = vmul.f32 %v525, 1.442695
      %v527 = vpow.pop %v526
      %v528 = vsel %vm251, %v527, 0.0
      %529 = vadd.xlane.f32.xlu0 %v528
      %v530 = vpop.xlane.xlu0 %529
      %v531 = vrcp.pop %v530
      %v532 = vmul.f32 %v527, %v531
      %v533 = vpack.c.bf16 %v532, %v532
      %534 = vrot.lane.b32.xlu0 %v248, 48
      %v535 = vpop.permute.xlu0 %534
      %v537 = vsel %vm251, %v533, 0
      %v540 = vsel %vm315, %v535, 0
      %542 = vmatprep.subr.bf16.mxu0 0
      %543 = vmatpush1.bf16.msra.mxu0 %v540
      %544 = vmatprep.subr.bf16.mxu0 0
      %545 = vmatpush1.bf16.msra.mxu0 0
      %546 = vmatprep.subr.bf16.mxu0 0
      %547 = vmatpush1.bf16.msra.mxu0 0
      %548 = vmatprep.subr.bf16.mxu0 0
      %549 = vmatpush1.bf16.msra.mxu0 0
      %550 = vmatprep.subr.bf16.mxu0 0
      %551 = vmatpush1.bf16.msra.mxu0 0
      %552 = vmatprep.subr.bf16.mxu0 0
      %553 = vmatpush1.bf16.msra.mxu0 0
      %554 = vmatprep.subr.bf16.mxu0 0
      %555 = vmatpush1.bf16.msra.mxu0 0
      %556 = vmatprep.subr.bf16.mxu0 0
      %557 = vmatpush1.bf16.msra.mxu0 0
      %558 = vmatprep.subr.bf16.mxu0 0
      %559 = vmatpush1.bf16.msra.mxu0 0
      %560 = vmatprep.subr.bf16.mxu0 0
      %561 = vmatpush1.bf16.msra.mxu0 0
      %562 = vmatprep.subr.bf16.mxu0 0
      %563 = vmatpush1.bf16.msra.mxu0 0
      %564 = vmatprep.subr.bf16.mxu0 0
      %565 = vmatpush1.bf16.msra.mxu0 0
      %566 = vmatprep.subr.bf16.mxu0 0
      %567 = vmatpush1.bf16.msra.mxu0 0
      %568 = vmatprep.subr.bf16.mxu0 0
      %569 = vmatpush1.bf16.msra.mxu0 0
      %570 = vmatprep.subr.bf16.mxu0 0
      %571 = vmatpush1.bf16.msra.mxu0 0
      %572 = vmatprep.subr.bf16.mxu0 0
      %573 = vmatpush1.bf16.msra.mxu0 0
      %574 = vmatprep.mubr.bf16.mxu0 0
      %575 = vmatmul.mubr.bf16.gmra.mrb[0].mxu0 %v537
      %v576 = vpop.f32.mrb[0].mxu0
      %v577 = vadd.f32 0.0, %v576
      %v578 = vpop.f32.mrb[0].mxu0
      %v579 = vpop.f32.mrb[0].mxu0
      %v580 = vpop.f32.mrb[0].mxu0
      %581 = vdwg.mxu0
      %582 = vrot.lane.b32.xlu0 %v361, 104
      %v583 = vpop.permute.xlu0 %582
      %584 = vrot.lane.b32.xlu0 %v248, 72
      %v585 = vpop.permute.xlu0 %584
      %v587 = vsel %vm251, %v583, 0
      %v590 = vsel %vm251, %v585, 0
      %592 = vmatprep.subr.bf16.mxu0 0
      %593 = vmatpush1.bf16.xpose.msra.mxu0 %v590
      %594 = vmatprep.subr.bf16.mxu0 0
      %595 = vmatpush1.bf16.xpose.msra.mxu0 0
      %596 = vmatprep.subr.bf16.mxu0 0
      %597 = vmatpush1.bf16.xpose.msra.mxu0 0
      %598 = vmatprep.subr.bf16.mxu0 0
      %599 = vmatpush1.bf16.xpose.msra.mxu0 0
      %600 = vmatprep.subr.bf16.mxu0 0
      %601 = vmatpush1.bf16.xpose.msra.mxu0 0
      %602 = vmatprep.subr.bf16.mxu0 0
      %603 = vmatpush1.bf16.xpose.msra.mxu0 0
      %604 = vmatprep.subr.bf16.mxu0 0
      %605 = vmatpush1.bf16.xpose.msra.mxu0 0
      %606 = vmatprep.subr.bf16.mxu0 0
      %607 = vmatpush1.bf16.xpose.msra.mxu0 0
      %608 = vmatprep.subr.bf16.mxu0 0
      %609 = vmatpush1.bf16.xpose.msra.mxu0 0
      %610 = vmatprep.subr.bf16.mxu0 0
      %611 = vmatpush1.bf16.xpose.msra.mxu0 0
      %612 = vmatprep.subr.bf16.mxu0 0
      %613 = vmatpush1.bf16.xpose.msra.mxu0 0
      %614 = vmatprep.subr.bf16.mxu0 0
      %615 = vmatpush1.bf16.xpose.msra.mxu0 0
      %616 = vmatprep.subr.bf16.mxu0 0
      %617 = vmatpush1.bf16.xpose.msra.mxu0 0
      %618 = vmatprep.subr.bf16.mxu0 0
      %619 = vmatpush1.bf16.xpose.msra.mxu0 0
      %620 = vmatprep.subr.bf16.mxu0 0
      %621 = vmatpush1.bf16.xpose.msra.mxu0 0
      %622 = vmatprep.subr.bf16.mxu0 0
      %623 = vmatpush1.bf16.xpose.msra.mxu0 0
      %624 = vmatprep.mubr.bf16.mxu0 0
      %625 = vmatmul.mubr.bf16.gmra.mrb[0].mxu0 %v587
      %v626 = vpop.f32.mrb[0].mxu0
      %v627 = vadd.f32 %v245, %v626
      %v628 = vpop.f32.mrb[0].mxu0
      %v629 = vpop.f32.mrb[0].mxu0
      %v630 = vpop.f32.mrb[0].mxu0
      %631 = vdwg.mxu0
      %v632 = vsel %vm251, %v627, -inf
      %633 = vmax.xlane.f32.xlu0 %v632
      %v634 = vpop.xlane.xlu0 %633
      %v635 = vsub.f32 %v627, %v634
      %v636 = vmul.f32 %v635, 1.442695
      %v637 = vpow.pop %v636
      %v638 = vsel %vm251, %v637, 0.0
      %639 = vadd.xlane.f32.xlu0 %v638
      %v640 = vpop.xlane.xlu0 %639
      %v641 = vrcp.pop %v640
      %v642 = vmul.f32 %v637, %v641
      %v643 = vpack.c.bf16 %v642, %v642
      %644 = vrot.lane.b32.xlu0 %v248, 40
      %v645 = vpop.permute.xlu0 %644
      %v647 = vsel %vm251, %v643, 0
      %v650 = vsel %vm315, %v645, 0
      %652 = vmatprep.subr.bf16.mxu0 0
      %653 = vmatpush1.bf16.msra.mxu0 %v650
      %654 = vmatprep.subr.bf16.mxu0 0
      %655 = vmatpush1.bf16.msra.mxu0 0
      %656 = vmatprep.subr.bf16.mxu0 0
      %657 = vmatpush1.bf16.msra.mxu0 0
      %658 = vmatprep.subr.bf16.mxu0 0
      %659 = vmatpush1.bf16.msra.mxu0 0
      %660 = vmatprep.subr.bf16.mxu0 0
      %661 = vmatpush1.bf16.msra.mxu0 0
      %662 = vmatprep.subr.bf16.mxu0 0
      %663 = vmatpush1.bf16.msra.mxu0 0
      %664 = vmatprep.subr.bf16.mxu0 0
      %665 = vmatpush1.bf16.msra.mxu0 0
      %666 = vmatprep.subr.bf16.mxu0 0
      %667 = vmatpush1.bf16.msra.mxu0 0
      %668 = vmatprep.subr.bf16.mxu0 0
      %669 = vmatpush1.bf16.msra.mxu0 0
      %670 = vmatprep.subr.bf16.mxu0 0
      %671 = vmatpush1.bf16.msra.mxu0 0
      %672 = vmatprep.subr.bf16.mxu0 0
      %673 = vmatpush1.bf16.msra.mxu0 0
      %674 = vmatprep.subr.bf16.mxu0 0
      %675 = vmatpush1.bf16.msra.mxu0 0
      %676 = vmatprep.subr.bf16.mxu0 0
      %677 = vmatpush1.bf16.msra.mxu0 0
      %678 = vmatprep.subr.bf16.mxu0 0
      %679 = vmatpush1.bf16.msra.mxu0 0
      %680 = vmatprep.subr.bf16.mxu0 0
      %681 = vmatpush1.bf16.msra.mxu0 0
      %682 = vmatprep.subr.bf16.mxu0 0
      %683 = vmatpush1.bf16.msra.mxu0 0
      %684 = vmatprep.mubr.bf16.mxu0 0
      %685 = vmatmul.mubr.bf16.gmra.mrb[0].mxu0 %v647
      %v686 = vpop.f32.mrb[0].mxu0
      %v687 = vadd.f32 0.0, %v686
      %v688 = vpop.f32.mrb[0].mxu0
      %v689 = vpop.f32.mrb[0].mxu0
      %v690 = vpop.f32.mrb[0].mxu0
      %691 = vdwg.mxu0
      %693 = vrot.lane.b32.xlu0 %v467, 8
      %v694 = vpop.permute.xlu0 %693
      %697 = vrot.lane.b32.xlu0 %v577, 16
      %v698 = vpop.permute.xlu0 %697
      %701 = vrot.lane.b32.xlu0 %v687, 24
      %v702 = vpop.permute.xlu0 %701
      %v704 = vsel %vm251, %v354, %v694
      %vm705 = vcmask 130048
      %v706 = vsel %vm705, %v704, %v698
      %vm707 = vcmask 195584
      %v708 = vsel %vm707, %v706, %v702
      %v709 = vpack.c.bf16 %v708, %v708
      %vm710 = vcmask 257024
      %711 = vst.msk [vmem:[%s241] sm:$0xf] %vm710, %v709
      %p712 = scmp.lt.s32.totalorder %s18, 1
      %s713 = scalar_select %p712, %s18, 1
      %p714 = scmp.lt.s32.totalorder %s19, 0
      %s715 = scalar_select %p714, %s19, 0
      %s716 = sadd.s32 %s715, %s713
      %s717 = smul.addr %s716, 4
      %s718 = scalar_lea.vmem %s3, %s717
      // Predicated region
      $region33: #{bert_forward.12} parent=31 // pred_check
        %p719 = pneg %p128
      $region34: #{bert_forward.12} parent=31 // pred_check_branch
        %721 = sbr.rel (%p719) target = $region36
      $region35: #{bert_forward.12} parent=31 // pred_region
        _
      $region36: #{bert_forward.12} parent=31 // pred_fallthru
        _
    $region32: #{bert_forward.12} parent=5 // pred_fallthru
      _
    %p722 = scmp.le.s32.totalorder 2, %s9
    // Predicated region
    $region37: #{bert_forward.12} parent=5 // pred_check
      %p723 = pneg %p722
    $region38: #{bert_forward.12} parent=5 // pred_check_branch
      %725 = sbr.rel (%p723) target = $region40
    $region39: #{bert_forward.12} parent=5 // pred_region
      %s726 = ssub.s32 %s9, 2
      // Predicated region
      $region41: #{bert_forward.12} parent=39 // pred_check
        %p727 = pneg %p134
      $region42: #{bert_forward.12} parent=39 // pred_check_branch
        %729 = sbr.rel (%p727) target = $region44
      $region43: #{bert_forward.12} parent=39 // pred_region
        %p730 = scmp.lt.s32.totalorder %s20, 1
        %s731 = scalar_select %p730, %s20, 1
        %p732 = scmp.lt.s32.totalorder %s21, 0
        %s733 = scalar_select %p732, %s21, 0
        %s734 = sadd.s32 %s733, %s731
        %s735 = smul.addr %s734, 4
        %s736 = scalar_lea.vmem %s3, %s735
      $region44: #{bert_forward.12} parent=39 // pred_fallthru
        _
    $region40: #{bert_forward.12} parent=5 // pred_fallthru
      _
  $region6: #{bert_forward.12} parent=0 // loop_footer
    %s13 = sadd.s32 1, %s9
  $region7: #{bert_forward.12} parent=0 // loop_footer_branch
    %8 = sbr.rel target = $region3
  $region8: #{bert_forward.12} parent=0 // loop_exit
    _

// kernel: bert_forward.19
$region0: #{bert_forward.19}
  #allocation0 [shape = 'u32[]', space=smem, size = 0x4, offset = 0x4, fixed_abs, tag = 'smem constant byte address 0x4 - core index']
  #allocation1 [shape = 'u32[144,128]{1,0:T(1,128)}', space=vmem, size = 0x12000, scoped, tag = 'internal scratch']
  %s0 = inlined_call_operand.vmem [shape: f32[16,32], index: 0, kind: input, shape index: {}]
  %s1 = inlined_call_operand.vmem [shape: f32[1,32], index: 1, kind: input, shape index: {}]
  %s2 = inlined_call_operand.vmem [shape: f32[1,32], index: 2, kind: input, shape index: {}]
  %s3 = inlined_call_operand.vmem [shape: bf16[32,8], index: 3, kind: input, shape index: {}]
  %s4 = inlined_call_operand.vmem [shape: f32[1,8], index: 4, kind: input, shape index: {}]
  %s5 = inlined_call_operand.vmem [shape: f32[16,8], index: 5, kind: output, shape index: {}]
  %s6 = sld [smem:[#allocation0]]
  $region30: #{bert_forward.19} parent=0
    _
  %s8 = ssub.s32 1, %s6
  %s9 = scalar_select 0, %s8, %s6
  // Predicated region
  $region2: #{bert_forward.19} parent=0 // pred_check
    _
  $region3: #{bert_forward.19} parent=0 // pred_check_branch
    %11 = sbr.rel (0) target = $region5
  $region4: #{bert_forward.19} parent=0 // pred_region
    _
  $region5: #{bert_forward.19} parent=0 // pred_fallthru
    _
  // Predicated region
  $region6: #{bert_forward.19} parent=0 // pred_check
    _
  $region7: #{bert_forward.19} parent=0 // pred_check_branch
    %13 = sbr.rel (0) target = $region9
  $region8: #{bert_forward.19} parent=0 // pred_region
    _
  $region9: #{bert_forward.19} parent=0 // pred_fallthru
    _
  // Predicated region
  $region10: #{bert_forward.19} parent=0 // pred_check
    _
  $region11: #{bert_forward.19} parent=0 // pred_check_branch
    %15 = sbr.rel (0) target = $region13
  $region12: #{bert_forward.19} parent=0 // pred_region
    _
  $region13: #{bert_forward.19} parent=0 // pred_fallthru
    _
  // Predicated region
  $region14: #{bert_forward.19} parent=0 // pred_check
    _
  $region15: #{bert_forward.19} parent=0 // pred_check_branch
    %17 = sbr.rel (0) target = $region17
  $region16: #{bert_forward.19} parent=0 // pred_region
    _
  $region17: #{bert_forward.19} parent=0 // pred_fallthru
    _
  // Predicated region
  $region18: #{bert_forward.19} parent=0 // pred_check
    _
  $region19: #{bert_forward.19} parent=0 // pred_check_branch
    %19 = sbr.rel (0) target = $region21
  $region20: #{bert_forward.19} parent=0 // pred_region
    _
  $region21: #{bert_forward.19} parent=0 // pred_fallthru
    _
  %v21 = vld [vmem:[%s0] sm:$0xff]
  %v22 = vld [vmem:[%s0 + $0x8] sm:$0xff]
  %v23 = vld [vmem:[%s1] sm:$0x1]
  %v24 = vld [vmem:[%s2] sm:$0x1]
  %vm25 = vcmask 261120
  %v26 = vsel %vm25, %v21, 0.0
  %27 = vadd.xlane.f32.xlu0 %v26
  %v28 = vpop.xlane.xlu0 %27
  %v29 = vsel %vm25, %v22, 0.0
  %30 = vadd.xlane.f32.xlu0 %v29
  %v31 = vpop.xlane.xlu0 %30
  %v32 = vrcp.pop 32.0
  %v33 = vmul.f32 %v28, %v32
  %v34 = vmul.f32 %v31, %v32
  %v35 = vsub.f32 %v21, %v33
  %v36 = vsub.f32 %v22, %v34
  %v37 = vmul.f32 %v35, %v35
  %v38 = vmul.f32 %v36, %v36
  %v39 = vsel %vm25, %v37, 0.0
  %40 = vadd.xlane.f32.xlu0 %v39
  %v41 = vpop.xlane.xlu0 %40
  %v42 = vsel %vm25, %v38, 0.0
  %43 = vadd.xlane.f32.xlu0 %v42
  %v44 = vpop.xlane.xlu0 %43
  %v45 = vmul.f32 %v41, %v32
  %v46 = vmul.f32 %v44, %v32
  %v47 = vadd.f32 %v45, 1e-05
  %v48 = vadd.f32 %v46, 1e-05
  %v49 = vrsqrt.pop %v47
  %v50 = vrsqrt.pop %v48
  %v51 = vmul.f32 %v35, %v49
  %v52 = vmul.f32 %v36, %v50
  %v54 = vlaneseq
  %v55 = vshrl.u32 %v54, 7
  %v56 = vsub.s32 0, %v55
  %v57 = vrot.slane %v23, %v56
  %v59 = vmul.f32 %v51, %v57
  %v60 = vmul.f32 %v52, %v57
  %v62 = vlaneseq
  %v63 = vshrl.u32 %v62, 7
  %v64 = vsub.s32 0, %v63
  %v65 = vrot.slane %v24, %v64
  %v67 = vadd.f32 %v59, %v65
  %v68 = vadd.f32 %v60, %v65
  %v69 = vpack.c.bf16 %v68, %v67
  %v70 = vld [vmem:[%s3] sm:$0xf]
  %v71 = vld [vmem:[%s3 + $0x4] sm:$0xf]
  %v72 = vld [vmem:[%s3 + $0x8] sm:$0xf]
  %v73 = vld [vmem:[%s3 + $0xc] sm:$0xf]
  %v74 = vld [vmem:[%s4] sm:$0x1]
  %v76 = vlaneseq
  %v77 = vshrl.u32 %v76, 7
  %v78 = vsub.s32 0, %v77
  %v79 = vrot.slane %v74, %v78
  %v85 = vunpack.c.l.b16 %v70
  %v86 = vunpack.c.l.b16 %v71
  %v87 = vunpack.c.l.b16 %v72
  %v88 = vunpack.c.l.b16 %v73
  %v89 = vpack.c.b16 %v86, %v85
  %v90 = vpack.c.b16 %v88, %v87
  %v94 = vsel %vm25, %v69, 0
  %96 = vmatprep.subr.bf16.mxu0 0
  %97 = vmatpush1.bf16.msra.mxu0 %v89
  %98 = vmatprep.subr.bf16.mxu0 0
  %99 = vmatpush1.bf16.msra.mxu0 %v90
  %100 = vmatprep.subr.bf16.mxu0 0
  %101 = vmatpush1.bf16.msra.mxu0 0
  %102 = vmatprep.subr.bf16.mxu0 0
  %103 = vmatpush1.bf16.msra.mxu0 0
  %104 = vmatprep.subr.bf16.mxu0 0
  %105 = vmatpush1.bf16.msra.mxu0 0
  %106 = vmatprep.subr.bf16.mxu0 0
  %107 = vmatpush1.bf16.msra.mxu0 0
  %108 = vmatprep.subr.bf16.mxu0 0
  %109 = vmatpush1.bf16.msra.mxu0 0
  %110 = vmatprep.subr.bf16.mxu0 0
  %111 = vmatpush1.bf16.msra.mxu0 0
  %112 = vmatprep.subr.bf16.mxu0 0
  %113 = vmatpush1.bf16.msra.mxu0 0
  %114 = vmatprep.subr.bf16.mxu0 0
  %115 = vmatpush1.bf16.msra.mxu0 0
  %116 = vmatprep.subr.bf16.mxu0 0
  %117 = vmatpush1.bf16.msra.mxu0 0
  %118 = vmatprep.subr.bf16.mxu0 0
  %119 = vmatpush1.bf16.msra.mxu0 0
  %120 = vmatprep.subr.bf16.mxu0 0
  %121 = vmatpush1.bf16.msra.mxu0 0
  %122 = vmatprep.subr.bf16.mxu0 0
  %123 = vmatpush1.bf16.msra.mxu0 0
  %124 = vmatprep.subr.bf16.mxu0 0
  %125 = vmatpush1.bf16.msra.mxu0 0
  %126 = vmatprep.subr.bf16.mxu0 0
  %127 = vmatpush1.bf16.msra.mxu0 0
  %128 = vmatprep.mubr.bf16.mxu0 0
  %129 = vmatmul.mubr.bf16.gmra.mrb[0].mxu0 %v94
  %v130 = vpop.f32.mrb[0].mxu0
  %v131 = vadd.f32 %v79, %v130
  %v132 = vpop.f32.mrb[0].mxu0
  %v133 = vpop.f32.mrb[0].mxu0
  %v134 = vadd.f32 %v79, %v133
  %v135 = vpop.f32.mrb[0].mxu0
  %136 = vdwg.mxu0
  %139 = vrot.lane.b32.xlu0 %v131, 124
  %v140 = vpop.permute.xlu0 %139
  %141 = vrot.lane.b32.xlu0 %v134, 124
  %v142 = vpop.permute.xlu0 %141
  %v145 = vsub.f32 %v131, %v140
  %v146 = vsub.f32 %v134, %v142
  %v147 = vand.u32 2147483647, %v145
  %v148 = vand.u32 2147483647, %v146
  %v149 = vsub.f32 0.0, %v147
  %v150 = vsub.f32 0.0, %v148
  %v151 = vmul.f32 %v149, 1.442695
  %v152 = vpow.pop %v151
  %v153 = vmul.f32 %v150, 1.442695
  %v154 = vpow.pop %v153
  %vm155 = vcmp.ge.f32.partialorder %v145, 0.0
  %vm156 = vcmp.ge.f32.partialorder %v146, 0.0
  %v157 = vadd.f32 %v152, 1.0
  %v158 = vadd.f32 %v154, 1.0
  %v159 = vrcp.pop %v157
  %v160 = vmul.f32 1.0, %v159
  %v161 = vrcp.pop %v158
  %v162 = vmul.f32 1.0, %v161
  %v163 = vmul.f32 %v152, %v159
  %v164 = vmul.f32 %v154, %v161
  %v165 = vsel %vm155, %v160, %v163
  %v166 = vsel %vm156, %v162, %v164
  %v167 = vsub.f32 1.0, %v165
  %v168 = vsub.f32 1.0, %v166
  %171 = vrot.lane.b32.xlu0 %v167, 4
  %v172 = vpop.permute.xlu0 %171
  %173 = vrot.lane.b32.xlu0 %v168, 4
  %v174 = vpop.permute.xlu0 %173
  %vm177 = vcmask 31744
  %v178 = vsel %vm177, %v165, %v172
  %v179 = vsel %vm177, %v166, %v174
  %vm180 = vcmask 64512
  %181 = vst.msk [vmem:[%s5] sm:$0xff] %vm180, %v178
  %182 = vst.msk [vmem:[%s5 + $0x8] sm:$0xff] %vm180, %v179
  // Predicated region
  $region22: #{bert_forward.19} parent=0 // pred_check
    _
  $region23: #{bert_forward.19} parent=0 // pred_check_branch
    %184 = sbr.rel (0) target = $region25
  $region24: #{bert_forward.19} parent=0 // pred_region
    _
  $region25: #{bert_forward.19} parent=0 // pred_fallthru
    _
  // Predicated region
  $region26: #{bert_forward.19} parent=0 // pred_check
    _
  $region27: #{bert_forward.19} parent=0 // pred_check_branch
    %186 = sbr.rel (0) target = $region29
  $region28: #{bert_forward.19} parent=0 // pred_region
    _
  $region29: #{bert_forward.19} parent=0 // pred_fallthru
    _

// kernel: bert_forward.14
$region0: #{bert_forward.14}
  #allocation0 [shape = 'u32[]', space=smem, size = 0x4, offset = 0x4, fixed_abs, tag = 'smem constant byte address 0x4 - core index']
  #allocation1 [shape = 'u32[144,128]{1,0:T(1,128)}', space=vmem, size = 0x12000, scoped, tag = 'internal scratch']
  #allocation2 [shape = 'bf16[16,32]{1,0:T(16,128)(2,1)}', space=vmem, size = 0x1000, scoped, tag = 'scratch operand']
  #allocation3 [shape = 'f32[16,32]{1,0:T(8,128)}', space=vmem, size = 0x2000, scoped, tag = 'scratch operand']
  %s0 = inlined_call_operand.vmem [shape: f32[16,32], index: 0, kind: input, shape index: {}]
  %s1 = inlined_call_operand.vmem [shape: f32[1,32], index: 1, kind: input, shape index: {}]
  %s2 = inlined_call_operand.vmem [shape: f32[1,32], index: 2, kind: input, shape index: {}]
  %s3 = inlined_call_operand.vmem [shape: bf16[32,128], index: 3, kind: input, shape index: {}]
  %s4 = inlined_call_operand.vmem [shape: f32[1,128], index: 4, kind: input, shape index: {}]
  %s5 = inlined_call_operand.vmem [shape: bf16[128,32], index: 5, kind: input, shape index: {}]
  %s6 = inlined_call_operand.vmem [shape: f32[1,32], index: 6, kind: input, shape index: {}]
  %s7 = inlined_call_operand.vmem [shape: f32[16,32], index: 7, kind: output, shape index: {}]
  %s8 = sld [smem:[#allocation0]]
  $region46: #{bert_forward.14} parent=0
    _
  %s10 = ssub.s32 1, %s8
  %s11 = scalar_select 0, %s10, %s8
  // Predicated region
  $region2: #{bert_forward.14} parent=0 // pred_check
    _
  $region3: #{bert_forward.14} parent=0 // pred_check_branch
    %13 = sbr.rel (0) target = $region5
  $region4: #{bert_forward.14} parent=0 // pred_region
    _
  $region5: #{bert_forward.14} parent=0 // pred_fallthru
    _
  // Predicated region
  $region6: #{bert_forward.14} parent=0 // pred_check
    _
  $region7: #{bert_forward.14} parent=0 // pred_check_branch
    %15 = sbr.rel (0) target = $region9
  $region8: #{bert_forward.14} parent=0 // pred_region
    _
  $region9: #{bert_forward.14} parent=0 // pred_fallthru
    _
  // Predicated region
  $region10: #{bert_forward.14} parent=0 // pred_check
    _
  $region11: #{bert_forward.14} parent=0 // pred_check_branch
    %17 = sbr.rel (0) target = $region13
  $region12: #{bert_forward.14} parent=0 // pred_region
    _
  $region13: #{bert_forward.14} parent=0 // pred_fallthru
    _
  // Predicated region
  $region14: #{bert_forward.14} parent=0 // pred_check
    _
  $region15: #{bert_forward.14} parent=0 // pred_check_branch
    %19 = sbr.rel (0) target = $region17
  $region16: #{bert_forward.14} parent=0 // pred_region
    _
  $region17: #{bert_forward.14} parent=0 // pred_fallthru
    _
  // Predicated region
  $region18: #{bert_forward.14} parent=0 // pred_check
    _
  $region19: #{bert_forward.14} parent=0 // pred_check_branch
    %21 = sbr.rel (0) target = $region21
  $region20: #{bert_forward.14} parent=0 // pred_region
    _
  $region21: #{bert_forward.14} parent=0 // pred_fallthru
    _
  // Predicated region
  $region22: #{bert_forward.14} parent=0 // pred_check
    _
  $region23: #{bert_forward.14} parent=0 // pred_check_branch
    %23 = sbr.rel (0) target = $region25
  $region24: #{bert_forward.14} parent=0 // pred_region
    _
  $region25: #{bert_forward.14} parent=0 // pred_fallthru
    _
  // Predicated region
  $region26: #{bert_forward.14} parent=0 // pred_check
    _
  $region27: #{bert_forward.14} parent=0 // pred_check_branch
    %25 = sbr.rel (0) target = $region29
  $region28: #{bert_forward.14} parent=0 // pred_region
    _
  $region29: #{bert_forward.14} parent=0 // pred_fallthru
    _
  %p27 = scmp.eq.s32.totalorder 0, 0
  // Predicated region
  $region30: #{bert_forward.14} parent=0 // pred_check
    %p28 = pneg %p27
  $region31: #{bert_forward.14} parent=0 // pred_check_branch
    %30 = sbr.rel (%p28) target = $region33
  $region32: #{bert_forward.14} parent=0 // pred_region
    %v31 = vld [vmem:[%s0] sm:$0xff]
    %v32 = vld [vmem:[%s0 + $0x8] sm:$0xff]
    %v33 = vld [vmem:[%s1] sm:$0x1]
    %v34 = vld [vmem:[%s2] sm:$0x1]
    %vm35 = vcmask 261120
    %v36 = vsel %vm35, %v31, 0.0
    %37 = vadd.xlane.f32.xlu0 %v36
    %v38 = vpop.xlane.xlu0 %37
    %v39 = vsel %vm35, %v32, 0.0
    %40 = vadd.xlane.f32.xlu0 %v39
    %v41 = vpop.xlane.xlu0 %40
    %v42 = vrcp.pop 32.0
    %v43 = vmul.f32 %v38, %v42
    %v44 = vmul.f32 %v41, %v42
    %v45 = vsub.f32 %v31, %v43
    %v46 = vsub.f32 %v32, %v44
    %v47 = vmul.f32 %v45, %v45
    %v48 = vmul.f32 %v46, %v46
    %v49 = vsel %vm35, %v47, 0.0
    %50 = vadd.xlane.f32.xlu0 %v49
    %v51 = vpop.xlane.xlu0 %50
    %v52 = vsel %vm35, %v48, 0.0
    %53 = vadd.xlane.f32.xlu0 %v52
    %v54 = vpop.xlane.xlu0 %53
    %v55 = vmul.f32 %v51, %v42
    %v56 = vmul.f32 %v54, %v42
    %v57 = vadd.f32 %v55, 1e-05
    %v58 = vadd.f32 %v56, 1e-05
    %v59 = vrsqrt.pop %v57
    %v60 = vrsqrt.pop %v58
    %v61 = vmul.f32 %v45, %v59
    %v62 = vmul.f32 %v46, %v60
    %v64 = vlaneseq
    %v65 = vshrl.u32 %v64, 7
    %v66 = vsub.s32 0, %v65
    %v67 = vrot.slane %v33, %v66
    %v69 = vmul.f32 %v61, %v67
    %v70 = vmul.f32 %v62, %v67
    %v72 = vlaneseq
    %v73 = vshrl.u32 %v72, 7
    %v74 = vsub.s32 0, %v73
    %v75 = vrot.slane %v34, %v74
    %v77 = vadd.f32 %v69, %v75
    %v78 = vadd.f32 %v70, %v75
    %v79 = vpack.c.bf16 %v78, %v77
    %80 = vst.msk [vmem:[#allocation2] sm:$0xff] %vm35, %v79
    %81 = vst.msk [vmem:[#allocation3] sm:$0xff] %vm35, 0.0
    %82 = vst.msk [vmem:[#allocation3 + $0x8] sm:$0xff] %vm35, 0.0
  $region33: #{bert_forward.14} parent=0 // pred_fallthru
    _
  %v83 = vld [vmem:[#allocation2] sm:$0xff]
  %v84 = vld [vmem:[%s3] sm:$0xf]
  %v85 = vld [vmem:[%s3 + $0x4] sm:$0xf]
  %v86 = vld [vmem:[%s3 + $0x8] sm:$0xf]
  %v87 = vld [vmem:[%s3 + $0xc] sm:$0xf]
  %v88 = vld [vmem:[%s4] sm:$0x1]
  %v90 = vlaneseq
  %v91 = vshrl.u32 %v90, 7
  %v92 = vsub.s32 0, %v91
  %v93 = vrot.slane %v88, %v92
  %v99 = vunpack.c.l.b16 %v84
  %v100 = vunpack.c.l.b16 %v85
  %v101 = vunpack.c.l.b16 %v86
  %v102 = vunpack.c.l.b16 %v87
  %v103 = vpack.c.b16 %v100, %v99
  %v104 = vpack.c.b16 %v102, %v101
  %vm107 = vcmask 261120
  %v109 = vsel %vm107, %v83, 0
  %111 = vmatprep.subr.bf16.mxu0 0
  %112 = vmatpush1.bf16.msra.mxu0 %v103
  %113 = vmatprep.subr.bf16.mxu0 0
  %114 = vmatpush1.bf16.msra.mxu0 %v104
  %115 = vmatprep.subr.bf16.mxu0 0
  %116 = vmatpush1.bf16.msra.mxu0 0
  %117 = vmatprep.subr.bf16.mxu0 0
  %118 = vmatpush1.bf16.msra.mxu0 0
  %119 = vmatprep.subr.bf16.mxu0 0
  %120 = vmatpush1.bf16.msra.mxu0 0
  %121 = vmatprep.subr.bf16.mxu0 0
  %122 = vmatpush1.bf16.msra.mxu0 0
  %123 = vmatprep.subr.bf16.mxu0 0
  %124 = vmatpush1.bf16.msra.mxu0 0
  %125 = vmatprep.subr.bf16.mxu0 0
  %126 = vmatpush1.bf16.msra.mxu0 0
  %127 = vmatprep.subr.bf16.mxu0 0
  %128 = vmatpush1.bf16.msra.mxu0 0
  %129 = vmatprep.subr.bf16.mxu0 0
  %130 = vmatpush1.bf16.msra.mxu0 0
  %131 = vmatprep.subr.bf16.mxu0 0
  %132 = vmatpush1.bf16.msra.mxu0 0
  %133 = vmatprep.subr.bf16.mxu0 0
  %134 = vmatpush1.bf16.msra.mxu0 0
  %135 = vmatprep.subr.bf16.mxu0 0
  %136 = vmatpush1.bf16.msra.mxu0 0
  %137 = vmatprep.subr.bf16.mxu0 0
  %138 = vmatpush1.bf16.msra.mxu0 0
  %139 = vmatprep.subr.bf16.mxu0 0
  %140 = vmatpush1.bf16.msra.mxu0 0
  %141 = vmatprep.subr.bf16.mxu0 0
  %142 = vmatpush1.bf16.msra.mxu0 0
  %143 = vmatprep.mubr.bf16.mxu0 0
  %144 = vmatmul.mubr.bf16.gmra.mrb[0].mxu0 %v109
  %v145 = vpop.f32.mrb[0].mxu0
  %v146 = vadd.f32 %v93, %v145
  %v147 = vpop.f32.mrb[0].mxu0
  %v148 = vpop.f32.mrb[0].mxu0
  %v149 = vadd.f32 %v93, %v148
  %v150 = vpop.f32.mrb[0].mxu0
  %151 = vdwg.mxu0
  %v152 = vmul.f32 %v146, 0.5
  %v153 = vmul.f32 %v149, 0.5
  %v154 = vmul.f32 %v146, 0.70710677
  %v155 = vmul.f32 %v149, 0.70710677
  %v156 = verf.f32.pop %v154
  %v157 = verf.f32.pop %v155
  %v158 = vadd.f32 %v156, 1.0
  %v159 = vadd.f32 %v157, 1.0
  %v160 = vmul.f32 %v152, %v158
  %v161 = vmul.f32 %v153, %v159
  %v162 = vld [vmem:[#allocation3] sm:$0xff]
  %v163 = vld [vmem:[#allocation3 + $0x8] sm:$0xff]
  %v164 = vpack.c.bf16 %v161, %v160
  %v165 = vld [vmem:[%s5] sm:$0xf]
  %v166 = vld [vmem:[%s5 + $0x4] sm:$0xf]
  %v167 = vld [vmem:[%s5 + $0x8] sm:$0xf]
  %v168 = vld [vmem:[%s5 + $0xc] sm:$0xf]
  %v169 = vld [vmem:[%s5 + $0x10] sm:$0xf]
  %v170 = vld [vmem:[%s5 + $0x14] sm:$0xf]
  %v171 = vld [vmem:[%s5 + $0x18] sm:$0xf]
  %v172 = vld [vmem:[%s5 + $0x1c] sm:$0xf]
  %v173 = vld [vmem:[%s5 + $0x20] sm:$0xf]
  %v174 = vld [vmem:[%s5 + $0x24] sm:$0xf]
  %v175 = vld [vmem:[%s5 + $0x28] sm:$0xf]
  %v176 = vld [vmem:[%s5 + $0x2c] sm:$0xf]
  %v177 = vld [vmem:[%s5 + $0x30] sm:$0xf]
  %v178 = vld [vmem:[%s5 + $0x34] sm:$0xf]
  %v179 = vld [vmem:[%s5 + $0x38] sm:$0xf]
  %v180 = vld [vmem:[%s5 + $0x3c] sm:$0xf]
  %v197 = vunpack.c.l.b16 %v165
  %v198 = vunpack.c.l.b16 %v166
  %v199 = vunpack.c.l.b16 %v167
  %v200 = vunpack.c.l.b16 %v168
  %v201 = vunpack.c.l.b16 %v169
  %v202 = vunpack.c.l.b16 %v170
  %v203 = vunpack.c.l.b16 %v171
  %v204 = vunpack.c.l.b16 %v172
  %v205 = vunpack.c.l.b16 %v173
  %v206 = vunpack.c.l.b16 %v174
  %v207 = vunpack.c.l.b16 %v175
  %v208 = vunpack.c.l.b16 %v176
  %v209 = vunpack.c.l.b16 %v177
  %v210 = vunpack.c.l.b16 %v178
  %v211 = vunpack.c.l.b16 %v179
  %v212 = vunpack.c.l.b16 %v180
  %v213 = vpack.c.b16 %v198, %v197
  %v214 = vpack.c.b16 %v200, %v199
  %v215 = vpack.c.b16 %v202, %v201
  %v216 = vpack.c.b16 %v204, %v203
  %v217 = vpack.c.b16 %v206, %v205
  %v218 = vpack.c.b16 %v208, %v207
  %v219 = vpack.c.b16 %v210, %v209
  %v220 = vpack.c.b16 %v212, %v211
  %229 = vmatprep.subr.bf16.mxu0 0
  %230 = vmatpush1.bf16.msra.mxu0 %v213
  %231 = vmatprep.subr.bf16.mxu0 0
  %232 = vmatpush1.bf16.msra.mxu0 %v214
  %233 = vmatprep.subr.bf16.mxu0 0
  %234 = vmatpush1.bf16.msra.mxu0 %v215
  %235 = vmatprep.subr.bf16.mxu0 0
  %236 = vmatpush1.bf16.msra.mxu0 %v216
  %237 = vmatprep.subr.bf16.mxu0 0
  %238 = vmatpush1.bf16.msra.mxu0 %v217
  %239 = vmatprep.subr.bf16.mxu0 0
  %240 = vmatpush1.bf16.msra.mxu0 %v218
  %241 = vmatprep.subr.bf16.mxu0 0
  %242 = vmatpush1.bf16.msra.mxu0 %v219
  %243 = vmatprep.subr.bf16.mxu0 0
  %244 = vmatpush1.bf16.msra.mxu0 %v220
  %245 = vmatprep.subr.bf16.mxu0 0
  %246 = vmatpush1.bf16.msra.mxu0 0
  %247 = vmatprep.subr.bf16.mxu0 0
  %248 = vmatpush1.bf16.msra.mxu0 0
  %249 = vmatprep.subr.bf16.mxu0 0
  %250 = vmatpush1.bf16.msra.mxu0 0
  %251 = vmatprep.subr.bf16.mxu0 0
  %252 = vmatpush1.bf16.msra.mxu0 0
  %253 = vmatprep.subr.bf16.mxu0 0
  %254 = vmatpush1.bf16.msra.mxu0 0
  %255 = vmatprep.subr.bf16.mxu0 0
  %256 = vmatpush1.bf16.msra.mxu0 0
  %257 = vmatprep.subr.bf16.mxu0 0
  %258 = vmatpush1.bf16.msra.mxu0 0
  %259 = vmatprep.subr.bf16.mxu0 0
  %260 = vmatpush1.bf16.msra.mxu0 0
  %261 = vmatprep.mubr.bf16.mxu0 0
  %262 = vmatmul.mubr.bf16.gmra.mrb[0].mxu0 %v164
  %v263 = vpop.f32.mrb[0].mxu0
  %v264 = vadd.f32 0.0, %v263
  %v265 = vpop.f32.mrb[0].mxu0
  %v266 = vpop.f32.mrb[0].mxu0
  %v267 = vadd.f32 0.0, %v266
  %v268 = vpop.f32.mrb[0].mxu0
  %269 = vdwg.mxu0
  %v270 = vadd.f32 %v162, %v264
  %v271 = vadd.f32 %v163, %v267
  %272 = vst.msk [vmem:[#allocation3] sm:$0xff] %vm107, %v270
  %273 = vst.msk [vmem:[#allocation3 + $0x8] sm:$0xff] %vm107, %v271
  // Predicated region
  $region34: #{bert_forward.14} parent=0 // pred_check
    %p274 = pneg %p27
  $region35: #{bert_forward.14} parent=0 // pred_check_branch
    %276 = sbr.rel (%p274) target = $region37
  $region36: #{bert_forward.14} parent=0 // pred_region
    %v277 = vld [vmem:[#allocation3] sm:$0xff]
    %v278 = vld [vmem:[#allocation3 + $0x8] sm:$0xff]
    %v279 = vld [vmem:[%s6] sm:$0x1]
    %v281 = vlaneseq
    %v282 = vshrl.u32 %v281, 7
    %v283 = vsub.s32 0, %v282
    %v284 = vrot.slane %v279, %v283
    %v286 = vadd.f32 %v277, %v284
    %v287 = vadd.f32 %v278, %v284
    %v288 = vld [vmem:[%s0] sm:$0xff]
    %v289 = vld [vmem:[%s0 + $0x8] sm:$0xff]
    %v290 = vadd.f32 %v286, %v288
    %v291 = vadd.f32 %v287, %v289
    %292 = vst.msk [vmem:[%s7] sm:$0xff] %vm107, %v290
    %293 = vst.msk [vmem:[%s7 + $0x8] sm:$0xff] %vm107, %v291
  $region37: #{bert_forward.14} parent=0 // pred_fallthru
    _
  // Predicated region
  $region38: #{bert_forward.14} parent=0 // pred_check
    _
  $region39: #{bert_forward.14} parent=0 // pred_check_branch
    %295 = sbr.rel (0) target = $region41
  $region40: #{bert_forward.14} parent=0 // pred_region
    _
  $region41: #{bert_forward.14} parent=0 // pred_fallthru
    _
  // Predicated region
  $region42: #{bert_forward.14} parent=0 // pred_check
    _
  $region43: #{bert_forward.14} parent=0 // pred_check_branch
    %297 = sbr.rel (0) target = $region45
  $region44: #{bert_forward.14} parent=0 // pred_region
    _
  $region45: #{bert_forward.14} parent=0 // pred_fallthru
    _

</llo_original>
